<compile_context>
chip_gen: v7x
topology: tpu7x:2x2x1
jax: 0.10.0
libtpu: 0.0.40
codegen_flags: <defaults>
</compile_context>

<pallas_src>
import numpy as np
import jax
import jax.numpy as jnp
from jax.experimental import pallas as pl
from jax.experimental.pallas import tpu as pltpu

_VMEM_LIMIT = 32 * 1024 * 1024  # explicit scoped-VMEM budget, safe on v5e/v6e/v7x


# ---------------------------------------------------------------------------
# helpers
# ---------------------------------------------------------------------------
def _act(x, act):
    if act is None or act == "none":
        return x
    if act == "RE":
        return jnp.maximum(x, 0.0)
    if act == "HS":  # hardswish: x * relu6(x+3)/6
        return x * jnp.clip(x + 3.0, 0.0, 6.0) * (1.0 / 6.0)
    if act == "sigmoid":
        return jax.nn.sigmoid(x)
    raise ValueError(f"unknown act {act}")


def _cp(n_parallel_axes):
    sem = ("parallel",) * n_parallel_axes if n_parallel_axes else None
    return pltpu.CompilerParams(dimension_semantics=sem,
                                vmem_limit_bytes=_VMEM_LIMIT)


def _interp_matrix(out_size, in_size):
    """bilinear (align_corners=True) 1-D interpolation matrix, as in
    nn.UpsamplingBilinear2d."""
    M = np.zeros((out_size, in_size), dtype=np.float32)
    for i in range(out_size):
        src = 0.0 if (out_size == 1 or in_size == 1) else i * (in_size - 1) / (out_size - 1)
        i0 = int(np.floor(src))
        i1 = min(i0 + 1, in_size - 1)
        f = src - i0
        M[i, i0] += 1.0 - f
        M[i, i1] += f
    return M


def _kron_block(w, reps):
    """kron(I_reps, w): block-diagonal weight so a 1x1 conv stays a single
    matmul in the lane-collapsed (H, W*C) layout."""
    return jnp.kron(jnp.eye(reps, dtype=w.dtype), w)


# ---------------------------------------------------------------------------
# per-stage derived constants (built ONCE, outside the forward pass)
# ---------------------------------------------------------------------------
def prepare_stage(exp_p, blk_p, *, H, W, Cin, k, stride, act):
    pad = (k - 1) // 2
    C = exp_p["W"].shape[1] if exp_p is not None else Cin
    Cout = blk_p["pw"]["W"].shape[1]
    H1 = (H + 2 * pad - k) // stride + 1
    W1 = (W + 2 * pad - k) // stride + 1
    mip = blk_p["ca"]["W1"].shape[1]
    f32, bf16 = jnp.float32, jnp.bfloat16

    c = {"H": H, "W": W, "H1": H1, "W1": W1, "Cin": Cin, "C": C, "Cout": Cout,
         "k": k, "pad": pad, "stride": stride, "act": act, "mip": mip,
         "has_exp": exp_p is not None}

    if exp_p is not None:  # 1x1 expand as block-diag matmul (lane-collapsed)
        c["Wexp"] = _kron_block(exp_p["W"], W).astype(bf16)             # (W*Cin, W*C)
        c["bexp"] = jnp.tile(exp_p["b"], W).reshape(1, W * C).astype(f32)

    # depthwise conv 1 (taps at input width W, bias/act at output width W1)
    c["w1"] = jnp.tile(blk_p["dw1"]["w"], (1, 1, W)).reshape(k * k, W * C).astype(f32)
    c["b1"] = jnp.tile(blk_p["dw1"]["b"], W1).reshape(1, W1 * C).astype(f32)
    if stride != 1:  # exact 0/1 row / column selection matrices
        Sh = np.zeros((H1, H), np.float32)
        Sh[np.arange(H1), stride * np.arange(H1)] = 1.0
        Sw = np.zeros((W * C, W1 * C), np.float32)
        for j in range(W1):
            for cc in range(C):
                Sw[stride * j * C + cc, j * C + cc] = 1.0
        c["Sh"] = jnp.asarray(Sh)
        c["Sw"] = jnp.asarray(Sw)

    # coordinate attention, lane-collapsed
    ca = blk_p["ca"]
    c["Aavg"] = jnp.asarray(np.tile(np.eye(C, dtype=np.float32), (W1, 1)) / W1).astype(bf16)
    c["W1ca"] = ca["W1"].astype(bf16)                                    # (C, mip)
    c["b1ca"] = ca["b1"].reshape(1, mip).astype(f32)
    c["Wht"] = jnp.tile(ca["Wh"], (1, W1)).astype(bf16)                  # (mip, W1*C)
    c["bht"] = jnp.tile(ca["bh"], W1).reshape(1, W1 * C).astype(f32)
    c["W1bd"] = _kron_block(ca["W1"], W1).astype(bf16)                   # (W1*C, W1*mip)
    c["b1bd"] = jnp.tile(ca["b1"], W1).reshape(1, W1 * mip).astype(f32)
    c["Wwbd"] = _kron_block(ca["Ww"], W1).astype(bf16)                   # (W1*mip, W1*C)
    c["bwt"] = jnp.tile(ca["bw"], W1).reshape(1, W1 * C).astype(f32)

    # depthwise conv 2 (stride 1, at W1)
    c["w2"] = jnp.tile(blk_p["dw2"]["w"], (1, 1, W1)).reshape(k * k, W1 * C).astype(f32)
    c["b2"] = jnp.tile(blk_p["dw2"]["b"], W1).reshape(1, W1 * C).astype(f32)

    # 1x1 project (no act) as block-diag matmul
    c["Wpw"] = _kron_block(blk_p["pw"]["W"], W1).astype(bf16)            # (W1*C, W1*Cout)
    c["bpw"] = jnp.tile(blk_p["pw"]["b"], W1).reshape(1, W1 * Cout).astype(f32)
    return c


# ---------------------------------------------------------------------------
# fused line stage kernel:
#   [pw expand] -> dw1 -> CA -> dw2 -> pw project
#   (+ optional separable bilinear upsample of xl + identity + hardswish)
# ---------------------------------------------------------------------------
def fused_stage(x, c, *, final=None):
    N = x.shape[0]
    H, W, Cin, C, Cout = c["H"], c["W"], c["Cin"], c["C"], c["Cout"]
    H1, W1, k, pad = c["H1"], c["W1"], c["k"], c["pad"]
    stride, act, has_exp = c["stride"], c["act"], c["has_exp"]
    has_id = final is not None and final.get("x_id") is not None
    WC, W1C = W * C, W1 * C

    const_names = []
    if has_exp:
        const_names += ["Wexp", "bexp"]
    const_names += ["w1", "b1"]
    if stride != 1:
        const_names += ["Sh", "Sw"]
    const_names += ["Aavg", "W1ca", "b1ca", "Wht", "bht",
                    "W1bd", "b1bd", "Wwbd", "bwt", "w2", "b2", "Wpw", "bpw"]

    arrays = [x]
    specs = [pl.BlockSpec((1, H, W * Cin), lambda n: (n, 0, 0))]
    for name in const_names:
        arr = c[name]
        arrays.append(arr)
        specs.append(pl.BlockSpec(arr.shape, lambda n, z=(0,) * arr.ndim: z))
    if final is not None:
        xl = final["xl"]
        arrays.append(xl)
        specs.append(pl.BlockSpec((1,) + xl.shape[1:], lambda n: (n, 0, 0)))
        arrays.append(final["MwI"])
        specs.append(pl.BlockSpec(final["MwI"].shape, lambda n: (0, 0)))
        arrays.append(final["Mh"])
        specs.append(pl.BlockSpec(final["Mh"].shape, lambda n: (0, 0)))
        if has_id:
            arrays.append(final["x_id"])
            specs.append(pl.BlockSpec((1, H1, W1 * Cout), lambda n: (n, 0, 0)))
    n_in = len(arrays)

    def kernel(*refs):
        in_refs = refs[:n_in]
        o_ref = refs[n_in]
        pad1_ref = refs[n_in + 1]
        pad2_ref = refs[n_in + 2]
        it = iter(in_refs)
        x_ref = next(it)
        g = {name: next(it) for name in const_names}
        if final is not None:
            xl_ref = next(it)
            mwi_ref = next(it)
            mh_ref = next(it)
            id_ref = next(it) if has_id else None

        xin = x_ref[0]                                           # (H, W*Cin) f32
        # ---- 1x1 expand (+BN+act), bf16 MXU / f32 accum, lane-collapsed ----
        if has_exp:
            xe = _act(jnp.dot(xin.astype(jnp.bfloat16), g["Wexp"][...],
                              preferred_element_type=jnp.float32)
                      + g["bexp"][...], act)
        else:
            xe = xin                                             # (H, W*C)

        # ---- depthwise conv 1: halo built in a zeroed VMEM scratch ----
        pad1_ref[...] = jnp.zeros_like(pad1_ref)
        pad1_ref[pad:pad + H, pad * C:pad * C + WC] = xe
        xp = pad1_ref[...]                                       # (H+2p, (W+2p)*C)
        cols = [xp[:, kj * C: kj * C + WC] for kj in range(k)]   # hoisted col shifts
        w1 = g["w1"][...]
        acc = None
        for ki in range(k):                                      # static tap loop
            for kj in range(k):
                t = ki * k + kj
                # TODO(synk): bf16 tap MACs on v6e/v7x (f32 kept for v5e VPU).
                term = cols[kj][ki:ki + H, :] * w1[t:t + 1, :]
                acc = term if acc is None else acc + term
        if stride != 1:  # exact row / column subsample via 0/1 matmuls
            acc = jnp.dot(g["Sh"][...], acc, preferred_element_type=jnp.float32)
            acc = jnp.dot(acc, g["Sw"][...], preferred_element_type=jnp.float32)
        y1 = _act(acc + g["b1"][...], act)                       # (H1, W1*C)

        # ---- coordinate attention (fully lane-collapsed) ----
        ph = jnp.dot(y1.astype(jnp.bfloat16), g["Aavg"][...],
                     preferred_element_type=jnp.float32)         # W-pool -> (H1, C)
        yh = _act(jnp.dot(ph.astype(jnp.bfloat16), g["W1ca"][...],
                          preferred_element_type=jnp.float32) + g["b1ca"][...], "HS")
        ah = jax.nn.sigmoid(jnp.dot(yh.astype(jnp.bfloat16), g["Wht"][...],
                                    preferred_element_type=jnp.float32)
                            + g["bht"][...])                     # (H1, W1*C)
        pw_vec = jnp.mean(y1, axis=0, keepdims=True)             # H-pool -> (1, W1*C)
        yw = _act(jnp.dot(pw_vec.astype(jnp.bfloat16), g["W1bd"][...],
                          preferred_element_type=jnp.float32) + g["b1bd"][...], "HS")
        aw = jax.nn.sigmoid(jnp.dot(yw.astype(jnp.bfloat16), g["Wwbd"][...],
                                    preferred_element_type=jnp.float32)
                            + g["bwt"][...])                     # (1, W1*C)
        y2 = y1 * ah * aw

        # ---- depthwise conv 2 (stride 1) ----
        pad2_ref[...] = jnp.zeros_like(pad2_ref)
        pad2_ref[pad:pad + H1, pad * C:pad * C + W1C] = y2
        xp2 = pad2_ref[...]
        cols2 = [xp2[:, kj * C: kj * C + W1C] for kj in range(k)]
        w2 = g["w2"][...]
        acc2 = None
        for ki in range(k):
            for kj in range(k):
                t = ki * k + kj
                term = cols2[kj][ki:ki + H1, :] * w2[t:t + 1, :]
                acc2 = term if acc2 is None else acc2 + term
        y3 = _act(acc2 + g["b2"][...], act)                      # (H1, W1*C)

        # ---- 1x1 project (+BN, no act) ----
        y4 = jnp.dot(y3.astype(jnp.bfloat16), g["Wpw"][...],
                     preferred_element_type=jnp.float32) + g["bpw"][...]  # (H1, W1*Cout)

        # ---- fused epilogue: separable bilinear upsample + identity + HS ----
        if final is not None:
            up = jnp.dot(xl_ref[0].astype(jnp.bfloat16), mwi_ref[...],
                         preferred_element_type=jnp.float32)     # W-interp
            up = jnp.dot(mh_ref[...], up.astype(jnp.bfloat16),
                         preferred_element_type=jnp.float32)     # H-interp
            y4 = y4 + up
            if has_id:
                y4 = y4 + id_ref[0]
            y4 = _act(y4, "HS")
        o_ref[0] = y4

    Hp, Wp = H + 2 * pad, W + 2 * pad
    H1p, W1p = H1 + 2 * pad, W1 + 2 * pad
    return pl.pallas_call(
        kernel,
        out_shape=jax.ShapeDtypeStruct((N, H1, W1 * Cout), jnp.float32),
        grid=(N,),
        in_specs=specs,
        out_specs=pl.BlockSpec((1, H1, W1 * Cout), lambda n: (n, 0, 0)),
        scratch_shapes=[pltpu.VMEM((Hp, Wp * C), jnp.float32),
                        pltpu.VMEM((H1p, W1p * C), jnp.float32)],
        compiler_params=_cp(1),
    )(*arrays)


def fuse_hs(a, b):
    """hardswish(a + b) on lane-collapsed 2-D tensors (out_type=='L' fallback)."""
    M, L = a.shape

    def kernel(a_ref, b_ref, o_ref):
        o_ref[...] = _act(a_ref[...] + b_ref[...], "HS")

    return pl.pallas_call(kernel,
                          out_shape=jax.ShapeDtypeStruct((M, L), jnp.float32),
                          compiler_params=_cp(0))(a, b)


# ---------------------------------------------------------------------------
# TBlock: prepare (once) + forward
# ---------------------------------------------------------------------------
def prepare_tblock(params, *, in_c, out_c, k, act, out_type, xH_hw, xL_hw, size):
    Hh, Wh = xH_hw
    Hl, Wl = xL_hw
    pH, pL = params["H"], params["L"]
    strides = {"H1": 1, "H2": 1 if out_type == "H" else 2, "L1": 2, "L2": 1}

    sH1 = prepare_stage(pH["exp1"], pH["blk1"], H=Hh, W=Wh, Cin=in_c, k=k,
                        stride=strides["H1"], act=act)
    sH2 = prepare_stage(pH["exp2"], pH["blk2"], H=sH1["H1"], W=sH1["W1"],
                        Cin=sH1["Cout"], k=k, stride=strides["H2"], act=act)
    sL1 = prepare_stage(pL["exp1"], pL["blk1"], H=Hl, W=Wl, Cin=in_c, k=k,
                        stride=strides["L1"], act=act)
    sL2 = prepare_stage(pL["exp2"], pL["blk2"], H=sL1["H1"], W=sL1["W1"],
                        Cin=sL1["Cout"], k=k, stride=strides["L2"], act=act)

    prep = {"out_type": out_type,
            "use_res_connect": (in_c == out_c and out_type == "H"),
            "sH1": sH1, "sH2": sH2, "sL1": sL1, "sL2": sL2}
    if out_type == "H":
        Ht, Wt = size
        assert sH2["H1"] == Ht and sH2["W1"] == Wt, "H line must land on `size`"
        hl, wl = sL2["H1"], sL2["W1"]
        Co = sL2["Cout"]
        prep["Mh"] = jnp.asarray(_interp_matrix(Ht, hl)).astype(jnp.bfloat16)
        prep["MwI"] = jnp.asarray(
            np.kron(_interp_matrix(Wt, wl).T, np.eye(Co, dtype=np.float32))
        ).astype(jnp.bfloat16)
    return prep


def tblock_forward(x_list, prep):
    # boundary: NCHW (PyTorch convention) -> lane-collapsed NHWC.
    xH = jnp.transpose(x_list[0], (0, 2, 3, 1)).astype(jnp.float32)
    xL = jnp.transpose(x_list[1], (0, 2, 3, 1)).astype(jnp.float32)
    N, Hh, Wh, Cin = xH.shape
    _, Hl, Wl, _ = xL.shape
    xHc = xH.reshape(N, Hh, Wh * Cin)
    xLc = xL.reshape(N, Hl, Wl * Cin)

    sH1, sH2, sL1, sL2 = prep["sH1"], prep["sH2"], prep["sL1"], prep["sL2"]

    # L line (feeds the fused H epilogue): two fused stage kernels.
    l1 = fused_stage(xLc, sL1)
    xL_out = fused_stage(l1, sL2)                        # (N, hl, wl*out_c)

    # H line: two fused stage kernels, final one carries upsample+residual+HS.
    h1 = fused_stage(xHc, sH1)
    if prep["out_type"] == "H":
        final = {"xl": xL_out, "Mh": prep["Mh"], "MwI": prep["MwI"],
                 "x_id": xHc if prep["use_res_connect"] else None}
        xH_out = fused_stage(h1, sH2, final=final)       # (N, Ht, Wt*out_c)
        Ht, Wt, Co = sH2["H1"], sH2["W1"], sH2["Cout"]
        hl, wl = sL2["H1"], sL2["W1"]
        out0 = jnp.transpose(xH_out.reshape(N, Ht, Wt, Co), (0, 3, 1, 2))
        out1 = jnp.transpose(xL_out.reshape(N, hl, wl, Co), (0, 3, 1, 2))
        return [out0, out1]
    else:
        # TODO(synk): out_type=='L' fallback (un-fused epilogue), requires the
        # two line outputs to share a resolution; not exercised by this config.
        xH_ = fused_stage(h1, sH2)
        fused = fuse_hs(xH_.reshape(N * xH_.shape[1], xH_.shape[2]),
                        xL_out.reshape(N * xL_out.shape[1], xL_out.shape[2]))
        Ht, Wt, Co = sH2["H1"], sH2["W1"], sH2["Cout"]
        y = jnp.transpose(fused.reshape(N, Ht, Wt, Co), (0, 3, 1, 2))
        return [y, y]


# ---------------------------------------------------------------------------
# deterministic parameter initialization (BN eval-mode stats folded in)
# ---------------------------------------------------------------------------
def _bn_fold(key, cout, eps):
    kg, kb, km, kv = jax.random.split(key, 4)
    gamma = 1.0 + 0.05 * jax.random.normal(kg, (cout,), jnp.float32)
    beta = 0.05 * jax.random.normal(kb, (cout,), jnp.float32)
    mean = 0.05 * jax.random.normal(km, (cout,), jnp.float32)
    var = 1.0 + 0.1 * jnp.abs(jax.random.normal(kv, (cout,), jnp.float32))
    s = gamma / jnp.sqrt(var + eps)
    return s, beta, mean


def init_stem_pw(key, cin, cout, eps=0.01):
    kw, kbn = jax.random.split(key, 2)
    W = 0.1 * jax.random.normal(kw, (cin, cout), jnp.float32)
    s, beta, mean = _bn_fold(kbn, cout, eps)
    return {"W": W * s[None, :], "b": beta - mean * s}


def init_stem_dw(key, c, k, eps=0.01):
    kw, kbn = jax.random.split(key, 2)
    w = 0.1 * jax.random.normal(kw, (k, k, c), jnp.float32)
    s, beta, mean = _bn_fold(kbn, c, eps)
    return {"w": w * s, "b": beta - mean * s}


def init_ca(key, c, reduction=16):
    mip = max(1, c // reduction)
    k1, k1b, kbn, kh, khb, kw_, kwb = jax.random.split(key, 7)
    W1 = 0.1 * jax.random.normal(k1, (c, mip), jnp.float32)
    b1 = 0.05 * jax.random.normal(k1b, (mip,), jnp.float32)
    s, beta, mean = _bn_fold(kbn, mip, 1e-5)
    Wh = 0.1 * jax.random.normal(kh, (mip, c), jnp.float32)
    bh = 0.05 * jax.random.normal(khb, (c,), jnp.float32)
    Ww = 0.1 * jax.random.normal(kw_, (mip, c), jnp.float32)
    bw = 0.05 * jax.random.normal(kwb, (c,), jnp.float32)
    return {"W1": W1 * s[None, :], "b1": (b1 - mean) * s + beta,
            "Wh": Wh, "bh": bh, "Ww": Ww, "bw": bw}


def init_tblock_params(key, *, in_c, H_c, L_c, exp_r, out_c, k):
    exp_c = exp_r * in_c
    H_exp = exp_r * H_c
    L_exp = exp_r * L_c
    keys = jax.random.split(key, 8)

    def blk(kk, c, cout):
        k1, k2, k3, k4 = jax.random.split(kk, 4)
        return {"dw1": init_stem_dw(k1, c, k), "ca": init_ca(k2, c),
                "dw2": init_stem_dw(k3, c, k), "pw": init_stem_pw(k4, c, cout)}

    return {
        "H": {"exp1": init_stem_pw(keys[0], in_c, exp_c),
              "blk1": blk(keys[1], exp_c, H_c),
              "exp2": init_stem_pw(keys[2], H_c, H_exp),
              "blk2": blk(keys[3], H_exp, out_c)},
        "L": {"exp1": init_stem_pw(keys[4], in_c, exp_c),
              "blk1": blk(keys[5], exp_c, L_c),
              "exp2": init_stem_pw(keys[6], L_c, L_exp),
              "blk2": blk(keys[7], L_exp, out_c)},
    }


# ---------------------------------------------------------------------------
if __name__ == "__main__":
    # TBlockConfig: in=16, H=16, L=16, exp_ratio=2, out=16, k=3, dil=1,
    #               activation='HS', out_type='H'; size=(16,16)
    # -> exp_channels = 32, CA mip = 2, use_res_connect = True
    key = jax.random.PRNGKey(0)
    kxh, kxl, kp = jax.random.split(key, 3)

    # inputs are NCHW like PyTorch; x_H high-res, x_L low-res branch.
    x_H = jax.random.normal(kxh, (2, 16, 16, 16), jnp.float32)  # (N, C, H, W)
    x_L = jax.random.normal(kxl, (2, 16, 8, 8), jnp.float32)    # (N, C, H, W)

    params = init_tblock_params(kp, in_c=16, H_c=16, L_c=16, exp_r=2,
                                out_c=16, k=3)

    # TODO(synk): BatchNorm layers are evaluated in eval mode (running stats
    # folded into conv weights); training-mode batch statistics not reproduced.
    prep = prepare_tblock(params, in_c=16, out_c=16, k=3, act="HS",
                          out_type="H", xH_hw=(16, 16), xL_hw=(8, 8),
                          size=(16, 16))

    out = tblock_forward([x_H, x_L], prep)
    out = [jax.block_until_ready(o) for o in out]
    assert out[0].shape == (2, 16, 16, 16)
    assert out[1].shape == (2, 16, 4, 4)
    assert all(bool(jnp.all(jnp.isfinite(o))) for o in out)
    print("KERNEL_OK")
</pallas_src>

<mosaic_0001>
module attributes {stable_mosaic.version = 11 : i64} {
  func.func @kernel(%arg0: i32, %arg1: memref<1x8x128xf32, #tpu.memory_space<vmem>>, %arg2: memref<128x256xbf16, #tpu.memory_space<vmem>>, %arg3: memref<1x256xf32, #tpu.memory_space<vmem>>, %arg4: memref<9x256xf32, #tpu.memory_space<vmem>>, %arg5: memref<1x128xf32, #tpu.memory_space<vmem>>, %arg6: memref<4x8xf32, #tpu.memory_space<vmem>>, %arg7: memref<256x128xf32, #tpu.memory_space<vmem>>, %arg8: memref<128x32xbf16, #tpu.memory_space<vmem>>, %arg9: memref<32x2xbf16, #tpu.memory_space<vmem>>, %arg10: memref<1x2xf32, #tpu.memory_space<vmem>>, %arg11: memref<2x128xbf16, #tpu.memory_space<vmem>>, %arg12: memref<1x128xf32, #tpu.memory_space<vmem>>, %arg13: memref<128x8xbf16, #tpu.memory_space<vmem>>, %arg14: memref<1x8xf32, #tpu.memory_space<vmem>>, %arg15: memref<8x128xbf16, #tpu.memory_space<vmem>>, %arg16: memref<1x128xf32, #tpu.memory_space<vmem>>, %arg17: memref<9x128xf32, #tpu.memory_space<vmem>>, %arg18: memref<1x128xf32, #tpu.memory_space<vmem>>, %arg19: memref<128x64xbf16, #tpu.memory_space<vmem>>, %arg20: memref<1x64xf32, #tpu.memory_space<vmem>>, %arg21: memref<1x4x64xf32, #tpu.memory_space<vmem>>, %arg22: memref<10x320xf32, #tpu.memory_space<vmem>>, %arg23: memref<6x192xf32, #tpu.memory_space<vmem>>) attributes {dimension_semantics = [#tpu.dimension_semantics<parallel>], iteration_bounds = array<i64: 2>, scalar_prefetch = 0 : i64, scratch_operands = 2 : i64, tpu.core_type = #tpu.core_type<tc>, window_params = [{transform_indices = @transform_0, window_bounds = array<i64: 1, 8, 128>}, {pipeline_mode = #tpu.pipeline_mode<synchronous>, transform_indices = @transform_1, window_bounds = array<i64: 128, 256>}, {pipeline_mode = #tpu.pipeline_mode<synchronous>, transform_indices = @transform_2, window_bounds = array<i64: 1, 256>}, {pipeline_mode = #tpu.pipeline_mode<synchronous>, transform_indices = @transform_3, window_bounds = array<i64: 9, 256>}, {pipeline_mode = #tpu.pipeline_mode<synchronous>, transform_indices = @transform_4, window_bounds = array<i64: 1, 128>}, {pipeline_mode = #tpu.pipeline_mode<synchronous>, transform_indices = @transform_5, window_bounds = array<i64: 4, 8>}, {pipeline_mode = #tpu.pipeline_mode<synchronous>, transform_indices = @transform_6, window_bounds = array<i64: 256, 128>}, {pipeline_mode = #tpu.pipeline_mode<synchronous>, transform_indices = @transform_7, window_bounds = array<i64: 128, 32>}, {pipeline_mode = #tpu.pipeline_mode<synchronous>, transform_indices = @transform_8, window_bounds = array<i64: 32, 2>}, {pipeline_mode = #tpu.pipeline_mode<synchronous>, transform_indices = @transform_9, window_bounds = array<i64: 1, 2>}, {pipeline_mode = #tpu.pipeline_mode<synchronous>, transform_indices = @transform_10, window_bounds = array<i64: 2, 128>}, {pipeline_mode = #tpu.pipeline_mode<synchronous>, transform_indices = @transform_11, window_bounds = array<i64: 1, 128>}, {pipeline_mode = #tpu.pipeline_mode<synchronous>, transform_indices = @transform_12, window_bounds = array<i64: 128, 8>}, {pipeline_mode = #tpu.pipeline_mode<synchronous>, transform_indices = @transform_13, window_bounds = array<i64: 1, 8>}, {pipeline_mode = #tpu.pipeline_mode<synchronous>, transform_indices = @transform_14, window_bounds = array<i64: 8, 128>}, {pipeline_mode = #tpu.pipeline_mode<synchronous>, transform_indices = @transform_15, window_bounds = array<i64: 1, 128>}, {pipeline_mode = #tpu.pipeline_mode<synchronous>, transform_indices = @transform_16, window_bounds = array<i64: 9, 128>}, {pipeline_mode = #tpu.pipeline_mode<synchronous>, transform_indices = @transform_17, window_bounds = array<i64: 1, 128>}, {pipeline_mode = #tpu.pipeline_mode<synchronous>, transform_indices = @transform_18, window_bounds = array<i64: 128, 64>}, {pipeline_mode = #tpu.pipeline_mode<synchronous>, transform_indices = @transform_19, window_bounds = array<i64: 1, 64>}, {transform_indices = @transform_20, window_bounds = array<i64: 1, 4, 64>}]} {
    %c0 = arith.constant 0 : index
    %c0_0 = arith.constant 0 : index
    %c0_1 = arith.constant 0 : index
    %0 = vector.load %arg1[%c0, %c0_0, %c0_1] : memref<1x8x128xf32, #tpu.memory_space<vmem>>, vector<1x8x128xf32>
    %1 = vector.shape_cast %0 : vector<1x8x128xf32> to vector<8x128xf32>
    %2 = arith.truncf %1 : vector<8x128xf32> to vector<8x128xbf16>
    %c0_2 = arith.constant 0 : index
    %c0_3 = arith.constant 0 : index
    %3 = vector.load %arg2[%c0_2, %c0_3] : memref<128x256xbf16, #tpu.memory_space<vmem>>, vector<128x256xbf16>
    %cst = arith.constant dense<0.000000e+00> : vector<8x256xf32>
    %4 = tpu.matmul %2, %3, %cst {dimension_numbers = #tpu.dot_dimension_numbers<[1], [0], [0], [1], [0, 0, 1, 1], [], []>} : vector<8x128xbf16>, vector<128x256xbf16>, vector<8x256xf32> -> vector<8x256xf32>
    %c0_4 = arith.constant 0 : index
    %c0_5 = arith.constant 0 : index
    %5 = vector.load %arg3[%c0_4, %c0_5] : memref<1x256xf32, #tpu.memory_space<vmem>>, vector<1x256xf32>
    %6 = vector.broadcast %5 : vector<1x256xf32> to vector<8x256xf32>
    %7 = arith.addf %4, %6 : vector<8x256xf32>
    %cst_6 = arith.constant 3.000000e+00 : f32
    %8 = vector.broadcast %cst_6 : f32 to vector<8x256xf32>
    %9 = arith.addf %7, %8 : vector<8x256xf32>
    %cst_7 = arith.constant 0.000000e+00 : f32
    %cst_8 = arith.constant 6.000000e+00 : f32
    %10 = vector.broadcast %cst_7 : f32 to vector<8x256xf32>
    %11 = arith.maximumf %10, %9 : vector<8x256xf32>
    %12 = vector.broadcast %cst_8 : f32 to vector<8x256xf32>
    %13 = arith.minimumf %12, %11 : vector<8x256xf32>
    %14 = arith.mulf %7, %13 : vector<8x256xf32>
    %cst_9 = arith.constant 0.166666672 : f32
    %15 = vector.broadcast %cst_9 : f32 to vector<8x256xf32>
    %16 = arith.mulf %14, %15 : vector<8x256xf32>
    %cst_10 = arith.constant 0.000000e+00 : f32
    %17 = vector.broadcast %cst_10 : f32 to vector<10x320xf32>
    %c0_11 = arith.constant 0 : index
    %c0_12 = arith.constant 0 : index
    %18 = vector.load %arg22[%c0_11, %c0_12] : memref<10x320xf32, #tpu.memory_space<vmem>>, vector<10x320xf32>
    tpu.vector_store %arg22[%c0_11, %c0_12], %17 {strides = array<i32>} : memref<10x320xf32, #tpu.memory_space<vmem>>, vector<10x320xf32>,
    %c1 = arith.constant 1 : index
    %c32 = arith.constant 32 : index
    %19 = vector.load %arg22[%c1, %c32] : memref<10x320xf32, #tpu.memory_space<vmem>>, vector<8x256xf32>
    tpu.vector_store %arg22[%c1, %c32], %16 {strides = array<i32>} : memref<10x320xf32, #tpu.memory_space<vmem>>, vector<8x256xf32>,
    %c0_13 = arith.constant 0 : index
    %c0_14 = arith.constant 0 : index
    %20 = vector.load %arg22[%c0_13, %c0_14] : memref<10x320xf32, #tpu.memory_space<vmem>>, vector<10x320xf32>
    %21 = vector.extract_strided_slice %20 {offsets = [0, 0], sizes = [10, 256], strides = [1, 1]} : vector<10x320xf32> to vector<10x256xf32>
    %22 = vector.extract_strided_slice %20 {offsets = [0, 32], sizes = [10, 256], strides = [1, 1]} : vector<10x320xf32> to vector<10x256xf32>
    %23 = vector.extract_strided_slice %20 {offsets = [0, 64], sizes = [10, 256], strides = [1, 1]} : vector<10x320xf32> to vector<10x256xf32>
    %c0_15 = arith.constant 0 : index
    %c0_16 = arith.constant 0 : index
    %24 = vector.load %arg4[%c0_15, %c0_16] : memref<9x256xf32, #tpu.memory_space<vmem>>, vector<9x256xf32>
    %25 = vector.extract_strided_slice %21 {offsets = [0, 0], sizes = [8, 256], strides = [1, 1]} : vector<10x256xf32> to vector<8x256xf32>
    %26 = vector.extract_strided_slice %24 {offsets = [0, 0], sizes = [1, 256], strides = [1, 1]} : vector<9x256xf32> to vector<1x256xf32>
    %27 = vector.broadcast %26 : vector<1x256xf32> to vector<8x256xf32>
    %28 = arith.mulf %25, %27 : vector<8x256xf32>
    %29 = vector.extract_strided_slice %22 {offsets = [0, 0], sizes = [8, 256], strides = [1, 1]} : vector<10x256xf32> to vector<8x256xf32>
    %30 = vector.extract_strided_slice %24 {offsets = [1, 0], sizes = [1, 256], strides = [1, 1]} : vector<9x256xf32> to vector<1x256xf32>
    %31 = vector.broadcast %30 : vector<1x256xf32> to vector<8x256xf32>
    %32 = arith.mulf %29, %31 : vector<8x256xf32>
    %33 = arith.addf %28, %32 : vector<8x256xf32>
    %34 = vector.extract_strided_slice %23 {offsets = [0, 0], sizes = [8, 256], strides = [1, 1]} : vector<10x256xf32> to vector<8x256xf32>
    %35 = vector.extract_strided_slice %24 {offsets = [2, 0], sizes = [1, 256], strides = [1, 1]} : vector<9x256xf32> to vector<1x256xf32>
    %36 = vector.broadcast %35 : vector<1x256xf32> to vector<8x256xf32>
    %37 = arith.mulf %34, %36 : vector<8x256xf32>
    %38 = arith.addf %33, %37 : vector<8x256xf32>
    %39 = vector.extract_strided_slice %21 {offsets = [1, 0], sizes = [8, 256], strides = [1, 1]} : vector<10x256xf32> to vector<8x256xf32>
    %40 = vector.extract_strided_slice %24 {offsets = [3, 0], sizes = [1, 256], strides = [1, 1]} : vector<9x256xf32> to vector<1x256xf32>
    %41 = vector.broadcast %40 : vector<1x256xf32> to vector<8x256xf32>
    %42 = arith.mulf %39, %41 : vector<8x256xf32>
    %43 = arith.addf %38, %42 : vector<8x256xf32>
    %44 = vector.extract_strided_slice %22 {offsets = [1, 0], sizes = [8, 256], strides = [1, 1]} : vector<10x256xf32> to vector<8x256xf32>
    %45 = vector.extract_strided_slice %24 {offsets = [4, 0], sizes = [1, 256], strides = [1, 1]} : vector<9x256xf32> to vector<1x256xf32>
    %46 = vector.broadcast %45 : vector<1x256xf32> to vector<8x256xf32>
    %47 = arith.mulf %44, %46 : vector<8x256xf32>
    %48 = arith.addf %43, %47 : vector<8x256xf32>
    %49 = vector.extract_strided_slice %23 {offsets = [1, 0], sizes = [8, 256], strides = [1, 1]} : vector<10x256xf32> to vector<8x256xf32>
    %50 = vector.extract_strided_slice %24 {offsets = [5, 0], sizes = [1, 256], strides = [1, 1]} : vector<9x256xf32> to vector<1x256xf32>
    %51 = vector.broadcast %50 : vector<1x256xf32> to vector<8x256xf32>
    %52 = arith.mulf %49, %51 : vector<8x256xf32>
    %53 = arith.addf %48, %52 : vector<8x256xf32>
    %54 = vector.extract_strided_slice %21 {offsets = [2, 0], sizes = [8, 256], strides = [1, 1]} : vector<10x256xf32> to vector<8x256xf32>
    %55 = vector.extract_strided_slice %24 {offsets = [6, 0], sizes = [1, 256], strides = [1, 1]} : vector<9x256xf32> to vector<1x256xf32>
    %56 = vector.broadcast %55 : vector<1x256xf32> to vector<8x256xf32>
    %57 = arith.mulf %54, %56 : vector<8x256xf32>
    %58 = arith.addf %53, %57 : vector<8x256xf32>
    %59 = vector.extract_strided_slice %22 {offsets = [2, 0], sizes = [8, 256], strides = [1, 1]} : vector<10x256xf32> to vector<8x256xf32>
    %60 = vector.extract_strided_slice %24 {offsets = [7, 0], sizes = [1, 256], strides = [1, 1]} : vector<9x256xf32> to vector<1x256xf32>
    %61 = vector.broadcast %60 : vector<1x256xf32> to vector<8x256xf32>
    %62 = arith.mulf %59, %61 : vector<8x256xf32>
    %63 = arith.addf %58, %62 : vector<8x256xf32>
    %64 = vector.extract_strided_slice %23 {offsets = [2, 0], sizes = [8, 256], strides = [1, 1]} : vector<10x256xf32> to vector<8x256xf32>
    %65 = vector.extract_strided_slice %24 {offsets = [8, 0], sizes = [1, 256], strides = [1, 1]} : vector<9x256xf32> to vector<1x256xf32>
    %66 = vector.broadcast %65 : vector<1x256xf32> to vector<8x256xf32>
    %67 = arith.mulf %64, %66 : vector<8x256xf32>
    %68 = arith.addf %63, %67 : vector<8x256xf32>
    %c0_17 = arith.constant 0 : index
    %c0_18 = arith.constant 0 : index
    %69 = vector.load %arg6[%c0_17, %c0_18] : memref<4x8xf32, #tpu.memory_space<vmem>>, vector<4x8xf32>
    %cst_19 = arith.constant dense<0.000000e+00> : vector<4x256xf32>
    %70 = tpu.matmul %69, %68, %cst_19 {dimension_numbers = #tpu.dot_dimension_numbers<[1], [0], [0], [1], [0, 0, 1, 1], [], []>} : vector<4x8xf32>, vector<8x256xf32>, vector<4x256xf32> -> vector<4x256xf32>
    %c0_20 = arith.constant 0 : index
    %c0_21 = arith.constant 0 : index
    %71 = vector.load %arg7[%c0_20, %c0_21] : memref<256x128xf32, #tpu.memory_space<vmem>>, vector<256x128xf32>
    %cst_22 = arith.constant dense<0.000000e+00> : vector<4x128xf32>
    %72 = tpu.matmul %70, %71, %cst_22 {dimension_numbers = #tpu.dot_dimension_numbers<[1], [0], [0], [1], [0, 0, 1, 1], [], []>} : vector<4x256xf32>, vector<256x128xf32>, vector<4x128xf32> -> vector<4x128xf32>
    %c0_23 = arith.constant 0 : index
    %c0_24 = arith.constant 0 : index
    %73 = vector.load %arg5[%c0_23, %c0_24] : memref<1x128xf32, #tpu.memory_space<vmem>>, vector<1x128xf32>
    %74 = vector.broadcast %73 : vector<1x128xf32> to vector<4x128xf32>
    %75 = arith.addf %72, %74 : vector<4x128xf32>
    %cst_25 = arith.constant 3.000000e+00 : f32
    %76 = vector.broadcast %cst_25 : f32 to vector<4x128xf32>
    %77 = arith.addf %75, %76 : vector<4x128xf32>
    %cst_26 = arith.constant 0.000000e+00 : f32
    %cst_27 = arith.constant 6.000000e+00 : f32
    %78 = vector.broadcast %cst_26 : f32 to vector<4x128xf32>
    %79 = arith.maximumf %78, %77 : vector<4x128xf32>
    %80 = vector.broadcast %cst_27 : f32 to vector<4x128xf32>
    %81 = arith.minimumf %80, %79 : vector<4x128xf32>
    %82 = arith.mulf %75, %81 : vector<4x128xf32>
    %cst_28 = arith.constant 0.166666672 : f32
    %83 = vector.broadcast %cst_28 : f32 to vector<4x128xf32>
    %84 = arith.mulf %82, %83 : vector<4x128xf32>
    %85 = arith.truncf %84 : vector<4x128xf32> to vector<4x128xbf16>
    %c0_29 = arith.constant 0 : index
    %c0_30 = arith.constant 0 : index
    %86 = vector.load %arg8[%c0_29, %c0_30] : memref<128x32xbf16, #tpu.memory_space<vmem>>, vector<128x32xbf16>
    %cst_31 = arith.constant dense<0.000000e+00> : vector<4x32xf32>
    %87 = tpu.matmul %85, %86, %cst_31 {dimension_numbers = #tpu.dot_dimension_numbers<[1], [0], [0], [1], [0, 0, 1, 1], [], []>} : vector<4x128xbf16>, vector<128x32xbf16>, vector<4x32xf32> -> vector<4x32xf32>
    %88 = arith.truncf %87 : vector<4x32xf32> to vector<4x32xbf16>
    %c0_32 = arith.constant 0 : index
    %c0_33 = arith.constant 0 : index
    %89 = vector.load %arg9[%c0_32, %c0_33] : memref<32x2xbf16, #tpu.memory_space<vmem>>, vector<32x2xbf16>
    %cst_34 = arith.constant dense<0.000000e+00> : vector<4x2xf32>
    %90 = tpu.matmul %88, %89, %cst_34 {dimension_numbers = #tpu.dot_dimension_numbers<[1], [0], [0], [1], [0, 0, 1, 1], [], []>} : vector<4x32xbf16>, vector<32x2xbf16>, vector<4x2xf32> -> vector<4x2xf32>
    %c0_35 = arith.constant 0 : index
    %c0_36 = arith.constant 0 : index
    %91 = vector.load %arg10[%c0_35, %c0_36] : memref<1x2xf32, #tpu.memory_space<vmem>>, vector<1x2xf32>
    %92 = vector.broadcast %91 : vector<1x2xf32> to vector<4x2xf32>
    %93 = arith.addf %90, %92 : vector<4x2xf32>
    %cst_37 = arith.constant 3.000000e+00 : f32
    %94 = vector.broadcast %cst_37 : f32 to vector<4x2xf32>
    %95 = arith.addf %93, %94 : vector<4x2xf32>
    %cst_38 = arith.constant 0.000000e+00 : f32
    %cst_39 = arith.constant 6.000000e+00 : f32
    %96 = vector.broadcast %cst_38 : f32 to vector<4x2xf32>
    %97 = arith.maximumf %96, %95 : vector<4x2xf32>
    %98 = vector.broadcast %cst_39 : f32 to vector<4x2xf32>
    %99 = arith.minimumf %98, %97 : vector<4x2xf32>
    %100 = arith.mulf %93, %99 : vector<4x2xf32>
    %cst_40 = arith.constant 0.166666672 : f32
    %101 = vector.broadcast %cst_40 : f32 to vector<4x2xf32>
    %102 = arith.mulf %100, %101 : vector<4x2xf32>
    %103 = arith.truncf %102 : vector<4x2xf32> to vector<4x2xbf16>
    %c0_41 = arith.constant 0 : index
    %c0_42 = arith.constant 0 : index
    %104 = vector.load %arg11[%c0_41, %c0_42] : memref<2x128xbf16, #tpu.memory_space<vmem>>, vector<2x128xbf16>
    %cst_43 = arith.constant dense<0.000000e+00> : vector<4x128xf32>
    %105 = tpu.matmul %103, %104, %cst_43 {dimension_numbers = #tpu.dot_dimension_numbers<[1], [0], [0], [1], [0, 0, 1, 1], [], []>} : vector<4x2xbf16>, vector<2x128xbf16>, vector<4x128xf32> -> vector<4x128xf32>
    %c0_44 = arith.constant 0 : index
    %c0_45 = arith.constant 0 : index
    %106 = vector.load %arg12[%c0_44, %c0_45] : memref<1x128xf32, #tpu.memory_space<vmem>>, vector<1x128xf32>
    %107 = vector.broadcast %106 : vector<1x128xf32> to vector<4x128xf32>
    %108 = arith.addf %105, %107 : vector<4x128xf32>
    %109 = arith.negf %108 : vector<4x128xf32>
    %110 = math.exp %109 : vector<4x128xf32>
    %cst_46 = arith.constant 1.000000e+00 : f32
    %111 = vector.broadcast %cst_46 : f32 to vector<4x128xf32>
    %112 = arith.addf %111, %110 : vector<4x128xf32>
    %113 = arith.divf %111, %112 : vector<4x128xf32>
    %cst_47 = arith.constant dense<0.000000e+00> : vector<128xf32>
    %114 = vector.multi_reduction <add>, %84, %cst_47 [0] : vector<4x128xf32> to vector<128xf32>
    %115 = vector.shape_cast %114 : vector<128xf32> to vector<1x128xf32>
    %cst_48 = arith.constant 4.000000e+00 : f32
    %116 = vector.broadcast %cst_48 : f32 to vector<1x128xf32>
    %117 = arith.divf %115, %116 : vector<1x128xf32>
    %118 = arith.truncf %117 : vector<1x128xf32> to vector<1x128xbf16>
    %c0_49 = arith.constant 0 : index
    %c0_50 = arith.constant 0 : index
    %119 = vector.load %arg13[%c0_49, %c0_50] : memref<128x8xbf16, #tpu.memory_space<vmem>>, vector<128x8xbf16>
    %cst_51 = arith.constant dense<0.000000e+00> : vector<1x8xf32>
    %120 = tpu.matmul %118, %119, %cst_51 {dimension_numbers = #tpu.dot_dimension_numbers<[1], [0], [0], [1], [0, 0, 1, 1], [], []>} : vector<1x128xbf16>, vector<128x8xbf16>, vector<1x8xf32> -> vector<1x8xf32>
    %c0_52 = arith.constant 0 : index
    %c0_53 = arith.constant 0 : index
    %121 = vector.load %arg14[%c0_52, %c0_53] : memref<1x8xf32, #tpu.memory_space<vmem>>, vector<1x8xf32>
    %122 = arith.addf %120, %121 : vector<1x8xf32>
    %cst_54 = arith.constant 3.000000e+00 : f32
    %123 = vector.broadcast %cst_54 : f32 to vector<1x8xf32>
    %124 = arith.addf %122, %123 : vector<1x8xf32>
    %cst_55 = arith.constant 0.000000e+00 : f32
    %cst_56 = arith.constant 6.000000e+00 : f32
    %125 = vector.broadcast %cst_55 : f32 to vector<1x8xf32>
    %126 = arith.maximumf %125, %124 : vector<1x8xf32>
    %127 = vector.broadcast %cst_56 : f32 to vector<1x8xf32>
    %128 = arith.minimumf %127, %126 : vector<1x8xf32>
    %129 = arith.mulf %122, %128 : vector<1x8xf32>
    %cst_57 = arith.constant 0.166666672 : f32
    %130 = vector.broadcast %cst_57 : f32 to vector<1x8xf32>
    %131 = arith.mulf %129, %130 : vector<1x8xf32>
    %132 = arith.truncf %131 : vector<1x8xf32> to vector<1x8xbf16>
    %c0_58 = arith.constant 0 : index
    %c0_59 = arith.constant 0 : index
    %133 = vector.load %arg15[%c0_58, %c0_59] : memref<8x128xbf16, #tpu.memory_space<vmem>>, vector<8x128xbf16>
    %cst_60 = arith.constant dense<0.000000e+00> : vector<1x128xf32>
    %134 = tpu.matmul %132, %133, %cst_60 {dimension_numbers = #tpu.dot_dimension_numbers<[1], [0], [0], [1], [0, 0, 1, 1], [], []>} : vector<1x8xbf16>, vector<8x128xbf16>, vector<1x128xf32> -> vector<1x128xf32>
    %c0_61 = arith.constant 0 : index
    %c0_62 = arith.constant 0 : index
    %135 = vector.load %arg16[%c0_61, %c0_62] : memref<1x128xf32, #tpu.memory_space<vmem>>, vector<1x128xf32>
    %136 = arith.addf %134, %135 : vector<1x128xf32>
    %137 = arith.negf %136 : vector<1x128xf32>
    %138 = math.exp %137 : vector<1x128xf32>
    %cst_63 = arith.constant 1.000000e+00 : f32
    %139 = vector.broadcast %cst_63 : f32 to vector<1x128xf32>
    %140 = arith.addf %139, %138 : vector<1x128xf32>
    %141 = arith.divf %139, %140 : vector<1x128xf32>
    %142 = arith.mulf %84, %113 : vector<4x128xf32>
    %143 = vector.broadcast %141 : vector<1x128xf32> to vector<4x128xf32>
    %144 = arith.mulf %142, %143 : vector<4x128xf32>
    %cst_64 = arith.constant 0.000000e+00 : f32
    %145 = vector.broadcast %cst_64 : f32 to vector<6x192xf32>
    %c0_65 = arith.constant 0 : index
    %c0_66 = arith.constant 0 : index
    %146 = vector.load %arg23[%c0_65, %c0_66] : memref<6x192xf32, #tpu.memory_space<vmem>>, vector<6x192xf32>
    tpu.vector_store %arg23[%c0_65, %c0_66], %145 {strides = array<i32>} : memref<6x192xf32, #tpu.memory_space<vmem>>, vector<6x192xf32>,
    %c1_67 = arith.constant 1 : index
    %c32_68 = arith.constant 32 : index
    %147 = vector.load %arg23[%c1_67, %c32_68] : memref<6x192xf32, #tpu.memory_space<vmem>>, vector<4x128xf32>
    tpu.vector_store %arg23[%c1_67, %c32_68], %144 {strides = array<i32>} : memref<6x192xf32, #tpu.memory_space<vmem>>, vector<4x128xf32>,
    %c0_69 = arith.constant 0 : index
    %c0_70 = arith.constant 0 : index
    %148 = vector.load %arg23[%c0_69, %c0_70] : memref<6x192xf32, #tpu.memory_space<vmem>>, vector<6x192xf32>
    %149 = vector.extract_strided_slice %148 {offsets = [0, 0], sizes = [6, 128], strides = [1, 1]} : vector<6x192xf32> to vector<6x128xf32>
    %150 = vector.extract_strided_slice %148 {offsets = [0, 32], sizes = [6, 128], strides = [1, 1]} : vector<6x192xf32> to vector<6x128xf32>
    %151 = vector.extract_strided_slice %148 {offsets = [0, 64], sizes = [6, 128], strides = [1, 1]} : vector<6x192xf32> to vector<6x128xf32>
    %c0_71 = arith.constant 0 : index
    %c0_72 = arith.constant 0 : index
    %152 = vector.load %arg17[%c0_71, %c0_72] : memref<9x128xf32, #tpu.memory_space<vmem>>, vector<9x128xf32>
    %153 = vector.extract_strided_slice %149 {offsets = [0, 0], sizes = [4, 128], strides = [1, 1]} : vector<6x128xf32> to vector<4x128xf32>
    %154 = vector.extract_strided_slice %152 {offsets = [0, 0], sizes = [1, 128], strides = [1, 1]} : vector<9x128xf32> to vector<1x128xf32>
    %155 = vector.broadcast %154 : vector<1x128xf32> to vector<4x128xf32>
    %156 = arith.mulf %153, %155 : vector<4x128xf32>
    %157 = vector.extract_strided_slice %150 {offsets = [0, 0], sizes = [4, 128], strides = [1, 1]} : vector<6x128xf32> to vector<4x128xf32>
    %158 = vector.extract_strided_slice %152 {offsets = [1, 0], sizes = [1, 128], strides = [1, 1]} : vector<9x128xf32> to vector<1x128xf32>
    %159 = vector.broadcast %158 : vector<1x128xf32> to vector<4x128xf32>
    %160 = arith.mulf %157, %159 : vector<4x128xf32>
    %161 = arith.addf %156, %160 : vector<4x128xf32>
    %162 = vector.extract_strided_slice %151 {offsets = [0, 0], sizes = [4, 128], strides = [1, 1]} : vector<6x128xf32> to vector<4x128xf32>
    %163 = vector.extract_strided_slice %152 {offsets = [2, 0], sizes = [1, 128], strides = [1, 1]} : vector<9x128xf32> to vector<1x128xf32>
    %164 = vector.broadcast %163 : vector<1x128xf32> to vector<4x128xf32>
    %165 = arith.mulf %162, %164 : vector<4x128xf32>
    %166 = arith.addf %161, %165 : vector<4x128xf32>
    %167 = vector.extract_strided_slice %149 {offsets = [1, 0], sizes = [4, 128], strides = [1, 1]} : vector<6x128xf32> to vector<4x128xf32>
    %168 = vector.extract_strided_slice %152 {offsets = [3, 0], sizes = [1, 128], strides = [1, 1]} : vector<9x128xf32> to vector<1x128xf32>
    %169 = vector.broadcast %168 : vector<1x128xf32> to vector<4x128xf32>
    %170 = arith.mulf %167, %169 : vector<4x128xf32>
    %171 = arith.addf %166, %170 : vector<4x128xf32>
    %172 = vector.extract_strided_slice %150 {offsets = [1, 0], sizes = [4, 128], strides = [1, 1]} : vector<6x128xf32> to vector<4x128xf32>
    %173 = vector.extract_strided_slice %152 {offsets = [4, 0], sizes = [1, 128], strides = [1, 1]} : vector<9x128xf32> to vector<1x128xf32>
    %174 = vector.broadcast %173 : vector<1x128xf32> to vector<4x128xf32>
    %175 = arith.mulf %172, %174 : vector<4x128xf32>
    %176 = arith.addf %171, %175 : vector<4x128xf32>
    %177 = vector.extract_strided_slice %151 {offsets = [1, 0], sizes = [4, 128], strides = [1, 1]} : vector<6x128xf32> to vector<4x128xf32>
    %178 = vector.extract_strided_slice %152 {offsets = [5, 0], sizes = [1, 128], strides = [1, 1]} : vector<9x128xf32> to vector<1x128xf32>
    %179 = vector.broadcast %178 : vector<1x128xf32> to vector<4x128xf32>
    %180 = arith.mulf %177, %179 : vector<4x128xf32>
    %181 = arith.addf %176, %180 : vector<4x128xf32>
    %182 = vector.extract_strided_slice %149 {offsets = [2, 0], sizes = [4, 128], strides = [1, 1]} : vector<6x128xf32> to vector<4x128xf32>
    %183 = vector.extract_strided_slice %152 {offsets = [6, 0], sizes = [1, 128], strides = [1, 1]} : vector<9x128xf32> to vector<1x128xf32>
    %184 = vector.broadcast %183 : vector<1x128xf32> to vector<4x128xf32>
    %185 = arith.mulf %182, %184 : vector<4x128xf32>
    %186 = arith.addf %181, %185 : vector<4x128xf32>
    %187 = vector.extract_strided_slice %150 {offsets = [2, 0], sizes = [4, 128], strides = [1, 1]} : vector<6x128xf32> to vector<4x128xf32>
    %188 = vector.extract_strided_slice %152 {offsets = [7, 0], sizes = [1, 128], strides = [1, 1]} : vector<9x128xf32> to vector<1x128xf32>
    %189 = vector.broadcast %188 : vector<1x128xf32> to vector<4x128xf32>
    %190 = arith.mulf %187, %189 : vector<4x128xf32>
    %191 = arith.addf %186, %190 : vector<4x128xf32>
    %192 = vector.extract_strided_slice %151 {offsets = [2, 0], sizes = [4, 128], strides = [1, 1]} : vector<6x128xf32> to vector<4x128xf32>
    %193 = vector.extract_strided_slice %152 {offsets = [8, 0], sizes = [1, 128], strides = [1, 1]} : vector<9x128xf32> to vector<1x128xf32>
    %194 = vector.broadcast %193 : vector<1x128xf32> to vector<4x128xf32>
    %195 = arith.mulf %192, %194 : vector<4x128xf32>
    %196 = arith.addf %191, %195 : vector<4x128xf32>
    %c0_73 = arith.constant 0 : index
    %c0_74 = arith.constant 0 : index
    %197 = vector.load %arg18[%c0_73, %c0_74] : memref<1x128xf32, #tpu.memory_space<vmem>>, vector<1x128xf32>
    %198 = vector.broadcast %197 : vector<1x128xf32> to vector<4x128xf32>
    %199 = arith.addf %196, %198 : vector<4x128xf32>
    %cst_75 = arith.constant 3.000000e+00 : f32
    %200 = vector.broadcast %cst_75 : f32 to vector<4x128xf32>
    %201 = arith.addf %199, %200 : vector<4x128xf32>
    %cst_76 = arith.constant 0.000000e+00 : f32
    %cst_77 = arith.constant 6.000000e+00 : f32
    %202 = vector.broadcast %cst_76 : f32 to vector<4x128xf32>
    %203 = arith.maximumf %202, %201 : vector<4x128xf32>
    %204 = vector.broadcast %cst_77 : f32 to vector<4x128xf32>
    %205 = arith.minimumf %204, %203 : vector<4x128xf32>
    %206 = arith.mulf %199, %205 : vector<4x128xf32>
    %cst_78 = arith.constant 0.166666672 : f32
    %207 = vector.broadcast %cst_78 : f32 to vector<4x128xf32>
    %208 = arith.mulf %206, %207 : vector<4x128xf32>
    %209 = arith.truncf %208 : vector<4x128xf32> to vector<4x128xbf16>
    %c0_79 = arith.constant 0 : index
    %c0_80 = arith.constant 0 : index
    %210 = vector.load %arg19[%c0_79, %c0_80] : memref<128x64xbf16, #tpu.memory_space<vmem>>, vector<128x64xbf16>
    %cst_81 = arith.constant dense<0.000000e+00> : vector<4x64xf32>
    %211 = tpu.matmul %209, %210, %cst_81 {dimension_numbers = #tpu.dot_dimension_numbers<[1], [0], [0], [1], [0, 0, 1, 1], [], []>} : vector<4x128xbf16>, vector<128x64xbf16>, vector<4x64xf32> -> vector<4x64xf32>
    %c0_82 = arith.constant 0 : index
    %c0_83 = arith.constant 0 : index
    %212 = vector.load %arg20[%c0_82, %c0_83] : memref<1x64xf32, #tpu.memory_space<vmem>>, vector<1x64xf32>
    %213 = vector.broadcast %212 : vector<1x64xf32> to vector<4x64xf32>
    %214 = arith.addf %211, %213 : vector<4x64xf32>
    %c0_84 = arith.constant 0 : index
    %c0_85 = arith.constant 0 : index
    %c0_86 = arith.constant 0 : index
    %215 = vector.load %arg21[%c0_84, %c0_85, %c0_86] : memref<1x4x64xf32, #tpu.memory_space<vmem>>, vector<1x4x64xf32>
    %216 = vector.shape_cast %215 : vector<1x4x64xf32> to vector<4x64xf32>
    %217 = vector.shape_cast %214 : vector<4x64xf32> to vector<1x4x64xf32>
    tpu.vector_store %arg21[%c0_84, %c0_85, %c0_86], %217 {strides = array<i32>} : memref<1x4x64xf32, #tpu.memory_space<vmem>>, vector<1x4x64xf32>,
    return
  }
  func.func @transform_0(%arg0: i32) -> (i32, i32, i32) {
    %c0_i32 = arith.constant 0 : i32
    %c0_i32_0 = arith.constant 0 : i32
    %c0_i32_1 = arith.constant 0 : i32
    return %arg0, %c0_i32, %c0_i32_0 : i32, i32, i32
  }
  func.func @transform_1(%arg0: i32) -> (i32, i32) {
    %c0_i32 = arith.constant 0 : i32
    %c0_i32_0 = arith.constant 0 : i32
    %c0_i32_1 = arith.constant 0 : i32
    return %c0_i32, %c0_i32_0 : i32, i32
  }
  func.func @transform_2(%arg0: i32) -> (i32, i32) {
    %c0_i32 = arith.constant 0 : i32
    %c0_i32_0 = arith.constant 0 : i32
    %c0_i32_1 = arith.constant 0 : i32
    return %c0_i32, %c0_i32_0 : i32, i32
  }
  func.func @transform_3(%arg0: i32) -> (i32, i32) {
    %c0_i32 = arith.constant 0 : i32
    %c0_i32_0 = arith.constant 0 : i32
    %c0_i32_1 = arith.constant 0 : i32
    return %c0_i32, %c0_i32_0 : i32, i32
  }
  func.func @transform_4(%arg0: i32) -> (i32, i32) {
    %c0_i32 = arith.constant 0 : i32
    %c0_i32_0 = arith.constant 0 : i32
    %c0_i32_1 = arith.constant 0 : i32
    return %c0_i32, %c0_i32_0 : i32, i32
  }
  func.func @transform_5(%arg0: i32) -> (i32, i32) {
    %c0_i32 = arith.constant 0 : i32
    %c0_i32_0 = arith.constant 0 : i32
    %c0_i32_1 = arith.constant 0 : i32
    return %c0_i32, %c0_i32_0 : i32, i32
  }
  func.func @transform_6(%arg0: i32) -> (i32, i32) {
    %c0_i32 = arith.constant 0 : i32
    %c0_i32_0 = arith.constant 0 : i32
    %c0_i32_1 = arith.constant 0 : i32
    return %c0_i32, %c0_i32_0 : i32, i32
  }
  func.func @transform_7(%arg0: i32) -> (i32, i32) {
    %c0_i32 = arith.constant 0 : i32
    %c0_i32_0 = arith.constant 0 : i32
    %c0_i32_1 = arith.constant 0 : i32
    return %c0_i32, %c0_i32_0 : i32, i32
  }
  func.func @transform_8(%arg0: i32) -> (i32, i32) {
    %c0_i32 = arith.constant 0 : i32
    %c0_i32_0 = arith.constant 0 : i32
    %c0_i32_1 = arith.constant 0 : i32
    return %c0_i32, %c0_i32_0 : i32, i32
  }
  func.func @transform_9(%arg0: i32) -> (i32, i32) {
    %c0_i32 = arith.constant 0 : i32
    %c0_i32_0 = arith.constant 0 : i32
    %c0_i32_1 = arith.constant 0 : i32
    return %c0_i32, %c0_i32_0 : i32, i32
  }
  func.func @transform_10(%arg0: i32) -> (i32, i32) {
    %c0_i32 = arith.constant 0 : i32
    %c0_i32_0 = arith.constant 0 : i32
    %c0_i32_1 = arith.constant 0 : i32
    return %c0_i32, %c0_i32_0 : i32, i32
  }
  func.func @transform_11(%arg0: i32) -> (i32, i32) {
    %c0_i32 = arith.constant 0 : i32
    %c0_i32_0 = arith.constant 0 : i32
    %c0_i32_1 = arith.constant 0 : i32
    return %c0_i32, %c0_i32_0 : i32, i32
  }
  func.func @transform_12(%arg0: i32) -> (i32, i32) {
    %c0_i32 = arith.constant 0 : i32
    %c0_i32_0 = arith.constant 0 : i32
    %c0_i32_1 = arith.constant 0 : i32
    return %c0_i32, %c0_i32_0 : i32, i32
  }
  func.func @transform_13(%arg0: i32) -> (i32, i32) {
    %c0_i32 = arith.constant 0 : i32
    %c0_i32_0 = arith.constant 0 : i32
    %c0_i32_1 = arith.constant 0 : i32
    return %c0_i32, %c0_i32_0 : i32, i32
  }
  func.func @transform_14(%arg0: i32) -> (i32, i32) {
    %c0_i32 = arith.constant 0 : i32
    %c0_i32_0 = arith.constant 0 : i32
    %c0_i32_1 = arith.constant 0 : i32
    return %c0_i32, %c0_i32_0 : i32, i32
  }
  func.func @transform_15(%arg0: i32) -> (i32, i32) {
    %c0_i32 = arith.constant 0 : i32
    %c0_i32_0 = arith.constant 0 : i32
    %c0_i32_1 = arith.constant 0 : i32
    return %c0_i32, %c0_i32_0 : i32, i32
  }
  func.func @transform_16(%arg0: i32) -> (i32, i32) {
    %c0_i32 = arith.constant 0 : i32
    %c0_i32_0 = arith.constant 0 : i32
    %c0_i32_1 = arith.constant 0 : i32
    return %c0_i32, %c0_i32_0 : i32, i32
  }
  func.func @transform_17(%arg0: i32) -> (i32, i32) {
    %c0_i32 = arith.constant 0 : i32
    %c0_i32_0 = arith.constant 0 : i32
    %c0_i32_1 = arith.constant 0 : i32
    return %c0_i32, %c0_i32_0 : i32, i32
  }
  func.func @transform_18(%arg0: i32) -> (i32, i32) {
    %c0_i32 = arith.constant 0 : i32
    %c0_i32_0 = arith.constant 0 : i32
    %c0_i32_1 = arith.constant 0 : i32
    return %c0_i32, %c0_i32_0 : i32, i32
  }
  func.func @transform_19(%arg0: i32) -> (i32, i32) {
    %c0_i32 = arith.constant 0 : i32
    %c0_i32_0 = arith.constant 0 : i32
    %c0_i32_1 = arith.constant 0 : i32
    return %c0_i32, %c0_i32_0 : i32, i32
  }
  func.func @transform_20(%arg0: i32) -> (i32, i32, i32) {
    %c0_i32 = arith.constant 0 : i32
    %c0_i32_0 = arith.constant 0 : i32
    %c0_i32_1 = arith.constant 0 : i32
    return %arg0, %c0_i32, %c0_i32_0 : i32, i32, i32
  }
}

</mosaic_0001>

<llo_original>
// kernel: tpu_custom_call.1
$region0: #{tpu_custom_call.1}
  #allocation0 [shape = 'u32[]', space=smem, size = 0x4, offset = 0x4, fixed_abs, tag = 'smem constant byte address 0x4 - core index']
  #allocation1 [shape = 'u32[144,128]{1,0:T(1,128)}', space=vmem, size = 0x12000, scoped, tag = 'internal scratch']
  #allocation2 [shape = 'f32[10,320]{1,0:T(8,128)}', space=vmem, size = 0x6000, scoped, tag = 'scratch operand']
  #allocation3 [shape = 'f32[6,192]{1,0:T(8,128)}', space=vmem, size = 0x2000, scoped, tag = 'scratch operand']
  %s0 = inlined_call_operand.hbm [shape: f32[2,8,128], index: 0, kind: input, shape index: {}]
  %s1 = inlined_call_operand.hbm [shape: bf16[128,256], index: 1, kind: input, shape index: {}]
  %s2 = inlined_call_operand.vmem [shape: f32[1,256], index: 2, kind: input, shape index: {}]
  %s3 = inlined_call_operand.hbm [shape: f32[9,256], index: 3, kind: input, shape index: {}]
  %s4 = inlined_call_operand.hbm [shape: f32[1,128], index: 4, kind: input, shape index: {}]
  %s5 = inlined_call_operand.hbm [shape: f32[4,8], index: 5, kind: input, shape index: {}]
  %s6 = inlined_call_operand.vmem [shape: f32[256,128], index: 6, kind: input, shape index: {}]
  %s7 = inlined_call_operand.vmem [shape: bf16[128,32], index: 7, kind: input, shape index: {}]
  %s8 = inlined_call_operand.vmem [shape: bf16[32,2], index: 8, kind: input, shape index: {}]
  %s9 = inlined_call_operand.hbm [shape: f32[1,2], index: 9, kind: input, shape index: {}]
  %s10 = inlined_call_operand.hbm [shape: bf16[2,128], index: 10, kind: input, shape index: {}]
  %s11 = inlined_call_operand.hbm [shape: f32[1,128], index: 11, kind: input, shape index: {}]
  %s12 = inlined_call_operand.vmem [shape: bf16[128,8], index: 12, kind: input, shape index: {}]
  %s13 = inlined_call_operand.hbm [shape: f32[1,8], index: 13, kind: input, shape index: {}]
  %s14 = inlined_call_operand.vmem [shape: bf16[8,128], index: 14, kind: input, shape index: {}]
  %s15 = inlined_call_operand.vmem [shape: f32[1,128], index: 15, kind: input, shape index: {}]
  %s16 = inlined_call_operand.vmem [shape: f32[9,128], index: 16, kind: input, shape index: {}]
  %s17 = inlined_call_operand.vmem [shape: f32[1,128], index: 17, kind: input, shape index: {}]
  %s18 = inlined_call_operand.vmem [shape: bf16[128,64], index: 18, kind: input, shape index: {}]
  %s19 = inlined_call_operand.vmem [shape: f32[1,64], index: 19, kind: input, shape index: {}]
  %s20 = inlined_call_operand.hbm [shape: f32[2,4,64], index: 20, kind: output, shape index: {}]
  %s21 = sld [smem:[#allocation0]]
  $region149: #{tpu_custom_call.1} parent=0
    _
  %s23 = ssub.s32 1, %s21
  %s24 = scalar_select 0, %s23, %s21
  $region1: #{tpu_custom_call.1} parent=0
    #allocation4 [shape = 'u8[8192]{0}', space=vmem, size = 0x2000, scoped, tag = 'input window, operand 0']
    #allocation5 [shape = 's32[2]{0}', space=sflag, size = 0x8, scoped, tag = 'scoped memory for tpu_custom_call.1']
    #allocation6 [shape = 's32[2]{0}', space=sflag, size = 0x8, scoped, tag = 'scoped memory for tpu_custom_call.1']
    #allocation7 [shape = 'u8[65536]{0}', space=vmem, size = 0x10000, scoped, tag = 'input window, operand 1, single buffered']
    #allocation8 [shape = 's32[1]{0}', space=sflag, size = 0x4, scoped, tag = 'scoped memory for tpu_custom_call.1']
    #allocation9 [shape = 'u8[16384]{0}', space=vmem, size = 0x4000, scoped, tag = 'input window, operand 3, single buffered']
    #allocation10 [shape = 'u8[512]{0}', space=vmem, size = 0x400, scoped, tag = 'input window, operand 4, single buffered']
    #allocation11 [shape = 's32[1]{0}', space=sflag, size = 0x4, scoped, tag = 'scoped memory for tpu_custom_call.1']
    #allocation12 [shape = 'u8[2048]{0}', space=vmem, size = 0x800, scoped, tag = 'input window, operand 5, single buffered']
    #allocation13 [shape = 'u8[512]{0}', space=vmem, size = 0x400, scoped, tag = 'input window, operand 9, single buffered']
    #allocation14 [shape = 's32[1]{0}', space=sflag, size = 0x4, scoped, tag = 'scoped memory for tpu_custom_call.1']
    #allocation15 [shape = 'u8[512]{0}', space=vmem, size = 0x400, scoped, tag = 'input window, operand 10, single buffered']
    #allocation16 [shape = 'u8[512]{0}', space=vmem, size = 0x400, scoped, tag = 'input window, operand 11, single buffered']
    #allocation17 [shape = 's32[1]{0}', space=sflag, size = 0x4, scoped, tag = 'scoped memory for tpu_custom_call.1']
    #allocation18 [shape = 'u8[512]{0}', space=vmem, size = 0x400, scoped, tag = 'input window, operand 13, single buffered']
    #allocation19 [shape = 'u8[4096]{0}', space=vmem, size = 0x1000, scoped, tag = 'output window, operand 0']
    %25 = vsyncpa [#allocation5], 0
    %s26 = scalar_lea.sflag [#allocation5], 1
    %27 = vsyncpa %s26, 0
    %28 = vsyncpa [#allocation8], 0
    %29 = vsyncpa [#allocation11], 0
    %30 = vsyncpa [#allocation14], 0
    %31 = vsyncpa [#allocation17], 0
    %32 = vsyncpa [#allocation6], 0
    %s33 = scalar_lea.sflag [#allocation6], 1
    %34 = vsyncpa %s33, 0
    loop: start=0, step=1, limit=4
    $region2: #{tpu_custom_call.1} parent=1 // loop_pre_header
      _
    $region3: #{tpu_custom_call.1} parent=1 // loop_header
      %s36 = sphi 0, %s40
      %p37 = scmp.ge.s32.totalorder %s36, 4
      %s46 = sphi 0, %s48
      %s49 = sphi 0, %s46
      %s50 = sphi 0, %s49
      %s66 = sphi 0, %s50
      %s70 = sphi 0, %s70
      %s72 = sphi 0, %s70
      %s73 = sphi 0, %s72
      %s87 = sphi 0, %s73
      %s91 = sphi 0, %s91
      %s93 = sphi 0, %s91
      %s94 = sphi 0, %s93
      %s108 = sphi 0, %s94
      %s112 = sphi 0, %s112
      %s114 = sphi 0, %s112
      %s115 = sphi 0, %s114
      %s129 = sphi 0, %s115
      %s133 = sphi 0, %s133
      %s135 = sphi 0, %s133
      %s136 = sphi 0, %s135
      %s150 = sphi 0, %s136
      %s154 = sphi 0, %s154
      %s156 = sphi 0, %s154
      %s157 = sphi 0, %s156
      %s171 = sphi 0, %s157
      %s175 = sphi 0, %s175
      %s177 = sphi 0, %s175
      %s178 = sphi 0, %s177
      %s192 = sphi 0, %s178
      %s196 = sphi 0, %s196
      %s198 = sphi 0, %s196
      %s199 = sphi 0, %s198
      %s213 = sphi 0, %s199
      %s217 = sphi 0, %s217
      %s219 = sphi 0, %s217
      %s220 = sphi 0, %s219
      %s234 = sphi 0, %s220
      %s238 = sphi 0, %s238
      %s240 = sphi 0, %s238
      %s241 = sphi 0, %s240
      %s255 = sphi 0, %s241
      %s259 = sphi 0, %s259
      %s261 = sphi 0, %s259
      %s262 = sphi 0, %s261
      %s276 = sphi 0, %s262
      %s280 = sphi 0, %s280
      %s282 = sphi 0, %s280
      %s283 = sphi 0, %s282
      %s297 = sphi 0, %s283
      %s301 = sphi 0, %s301
      %s303 = sphi 0, %s301
      %s304 = sphi 0, %s303
      %s318 = sphi 0, %s304
      %s322 = sphi 0, %s322
      %s324 = sphi 0, %s322
      %s325 = sphi 0, %s324
      %s339 = sphi 0, %s325
      %s343 = sphi 0, %s343
      %s345 = sphi 0, %s343
      %s346 = sphi 0, %s345
      %s360 = sphi 0, %s346
      %s364 = sphi 0, %s364
      %s366 = sphi 0, %s364
      %s367 = sphi 0, %s366
      %s381 = sphi 0, %s367
      %s385 = sphi 0, %s385
      %s387 = sphi 0, %s385
      %s388 = sphi 0, %s387
      %s402 = sphi 0, %s388
      %s406 = sphi 0, %s406
      %s408 = sphi 0, %s406
      %s409 = sphi 0, %s408
      %s423 = sphi 0, %s409
      %s427 = sphi 0, %s427
      %s429 = sphi 0, %s427
      %s430 = sphi 0, %s429
      %s444 = sphi 0, %s430
      %s448 = sphi 0, %s448
      %s450 = sphi 0, %s448
      %s451 = sphi 0, %s450
      %s465 = sphi 0, %s451
      %s471 = sphi 0, %s473
      %s474 = sphi 0, %s471
      %s475 = sphi 0, %s474
      %s491 = sphi 0, %s475
    $region4: #{tpu_custom_call.1} parent=1 // loop_header_branch
      %39 = sbr.rel (%p37) target = $region8
    $region5: #{tpu_custom_call.1} parent=1 // loop_body
      %s41 = ssub.s32 %s36, 1
      %s42 = ssub.s32 %s36, 2
      %s43 = sadd.s32 %s36, 1
      %s44 = ssub.s32 %s36, %s43
      %p45 = scmp.eq.s32.totalorder %s44, 0
      %s47 = sadd.s32 %s46, 1
      %s48 = scalar_select %p45, %s46, %s47
      %p51 = pneg %p45
      %p52 = scmp.eq.s32.totalorder %s36, 1
      %p53 = por %p51, %p52
      %p54 = scmp.ne.s32.totalorder %s46, %s49
      %p55 = scmp.eq.s32.totalorder %s36, 0
      %p56 = por %p54, %p55
      %p57 = scmp.ne.s32.totalorder %s46, %s49
      %p58 = scmp.eq.s32.totalorder %s41, 1
      %p59 = por %p57, %p58
      %p60 = scmp.ne.s32.totalorder %s49, %s50
      %p61 = scmp.eq.s32.totalorder %s41, 0
      %p62 = por %p60, %p61
      %p63 = scmp.ne.s32.totalorder %s49, %s50
      %p64 = scmp.eq.s32.totalorder %s42, 1
      %p65 = por %p63, %p64
      %p67 = scmp.ne.s32.totalorder %s50, %s66
      %p68 = scmp.eq.s32.totalorder %s42, 0
      %p69 = por %p67, %p68
      %s71 = sadd.s32 %s70, 1
      %p74 = scmp.eq.s32.totalorder %s36, 1
      %p75 = scmp.ne.s32.totalorder %s70, %s72
      %p76 = scmp.eq.s32.totalorder %s36, 0
      %p77 = por %p75, %p76
      %p78 = scmp.ne.s32.totalorder %s70, %s72
      %p79 = scmp.eq.s32.totalorder %s41, 1
      %p80 = por %p78, %p79
      %p81 = scmp.ne.s32.totalorder %s72, %s73
      %p82 = scmp.eq.s32.totalorder %s41, 0
      %p83 = por %p81, %p82
      %p84 = scmp.ne.s32.totalorder %s72, %s73
      %p85 = scmp.eq.s32.totalorder %s42, 1
      %p86 = por %p84, %p85
      %p88 = scmp.ne.s32.totalorder %s73, %s87
      %p89 = scmp.eq.s32.totalorder %s42, 0
      %p90 = por %p88, %p89
      %s92 = sadd.s32 %s91, 1
      %p95 = scmp.eq.s32.totalorder %s36, 1
      %p96 = scmp.ne.s32.totalorder %s91, %s93
      %p97 = scmp.eq.s32.totalorder %s36, 0
      %p98 = por %p96, %p97
      %p99 = scmp.ne.s32.totalorder %s91, %s93
      %p100 = scmp.eq.s32.totalorder %s41, 1
      %p101 = por %p99, %p100
      %p102 = scmp.ne.s32.totalorder %s93, %s94
      %p103 = scmp.eq.s32.totalorder %s41, 0
      %p104 = por %p102, %p103
      %p105 = scmp.ne.s32.totalorder %s93, %s94
      %p106 = scmp.eq.s32.totalorder %s42, 1
      %p107 = por %p105, %p106
      %p109 = scmp.ne.s32.totalorder %s94, %s108
      %p110 = scmp.eq.s32.totalorder %s42, 0
      %p111 = por %p109, %p110
      %s113 = sadd.s32 %s112, 1
      %p116 = scmp.eq.s32.totalorder %s36, 1
      %p117 = scmp.ne.s32.totalorder %s112, %s114
      %p118 = scmp.eq.s32.totalorder %s36, 0
      %p119 = por %p117, %p118
      %p120 = scmp.ne.s32.totalorder %s112, %s114
      %p121 = scmp.eq.s32.totalorder %s41, 1
      %p122 = por %p120, %p121
      %p123 = scmp.ne.s32.totalorder %s114, %s115
      %p124 = scmp.eq.s32.totalorder %s41, 0
      %p125 = por %p123, %p124
      %p126 = scmp.ne.s32.totalorder %s114, %s115
      %p127 = scmp.eq.s32.totalorder %s42, 1
      %p128 = por %p126, %p127
      %p130 = scmp.ne.s32.totalorder %s115, %s129
      %p131 = scmp.eq.s32.totalorder %s42, 0
      %p132 = por %p130, %p131
      %s134 = sadd.s32 %s133, 1
      %p137 = scmp.eq.s32.totalorder %s36, 1
      %p138 = scmp.ne.s32.totalorder %s133, %s135
      %p139 = scmp.eq.s32.totalorder %s36, 0
      %p140 = por %p138, %p139
      %p141 = scmp.ne.s32.totalorder %s133, %s135
      %p142 = scmp.eq.s32.totalorder %s41, 1
      %p143 = por %p141, %p142
      %p144 = scmp.ne.s32.totalorder %s135, %s136
      %p145 = scmp.eq.s32.totalorder %s41, 0
      %p146 = por %p144, %p145
      %p147 = scmp.ne.s32.totalorder %s135, %s136
      %p148 = scmp.eq.s32.totalorder %s42, 1
      %p149 = por %p147, %p148
      %p151 = scmp.ne.s32.totalorder %s136, %s150
      %p152 = scmp.eq.s32.totalorder %s42, 0
      %p153 = por %p151, %p152
      %s155 = sadd.s32 %s154, 1
      %p158 = scmp.eq.s32.totalorder %s36, 1
      %p159 = scmp.ne.s32.totalorder %s154, %s156
      %p160 = scmp.eq.s32.totalorder %s36, 0
      %p161 = por %p159, %p160
      %p162 = scmp.ne.s32.totalorder %s154, %s156
      %p163 = scmp.eq.s32.totalorder %s41, 1
      %p164 = por %p162, %p163
      %p165 = scmp.ne.s32.totalorder %s156, %s157
      %p166 = scmp.eq.s32.totalorder %s41, 0
      %p167 = por %p165, %p166
      %p168 = scmp.ne.s32.totalorder %s156, %s157
      %p169 = scmp.eq.s32.totalorder %s42, 1
      %p170 = por %p168, %p169
      %p172 = scmp.ne.s32.totalorder %s157, %s171
      %p173 = scmp.eq.s32.totalorder %s42, 0
      %p174 = por %p172, %p173
      %s176 = sadd.s32 %s175, 1
      %p179 = scmp.eq.s32.totalorder %s36, 1
      %p180 = scmp.ne.s32.totalorder %s175, %s177
      %p181 = scmp.eq.s32.totalorder %s36, 0
      %p182 = por %p180, %p181
      %p183 = scmp.ne.s32.totalorder %s175, %s177
      %p184 = scmp.eq.s32.totalorder %s41, 1
      %p185 = por %p183, %p184
      %p186 = scmp.ne.s32.totalorder %s177, %s178
      %p187 = scmp.eq.s32.totalorder %s41, 0
      %p188 = por %p186, %p187
      %p189 = scmp.ne.s32.totalorder %s177, %s178
      %p190 = scmp.eq.s32.totalorder %s42, 1
      %p191 = por %p189, %p190
      %p193 = scmp.ne.s32.totalorder %s178, %s192
      %p194 = scmp.eq.s32.totalorder %s42, 0
      %p195 = por %p193, %p194
      %s197 = sadd.s32 %s196, 1
      %p200 = scmp.eq.s32.totalorder %s36, 1
      %p201 = scmp.ne.s32.totalorder %s196, %s198
      %p202 = scmp.eq.s32.totalorder %s36, 0
      %p203 = por %p201, %p202
      %p204 = scmp.ne.s32.totalorder %s196, %s198
      %p205 = scmp.eq.s32.totalorder %s41, 1
      %p206 = por %p204, %p205
      %p207 = scmp.ne.s32.totalorder %s198, %s199
      %p208 = scmp.eq.s32.totalorder %s41, 0
      %p209 = por %p207, %p208
      %p210 = scmp.ne.s32.totalorder %s198, %s199
      %p211 = scmp.eq.s32.totalorder %s42, 1
      %p212 = por %p210, %p211
      %p214 = scmp.ne.s32.totalorder %s199, %s213
      %p215 = scmp.eq.s32.totalorder %s42, 0
      %p216 = por %p214, %p215
      %s218 = sadd.s32 %s217, 1
      %p221 = scmp.eq.s32.totalorder %s36, 1
      %p222 = scmp.ne.s32.totalorder %s217, %s219
      %p223 = scmp.eq.s32.totalorder %s36, 0
      %p224 = por %p222, %p223
      %p225 = scmp.ne.s32.totalorder %s217, %s219
      %p226 = scmp.eq.s32.totalorder %s41, 1
      %p227 = por %p225, %p226
      %p228 = scmp.ne.s32.totalorder %s219, %s220
      %p229 = scmp.eq.s32.totalorder %s41, 0
      %p230 = por %p228, %p229
      %p231 = scmp.ne.s32.totalorder %s219, %s220
      %p232 = scmp.eq.s32.totalorder %s42, 1
      %p233 = por %p231, %p232
      %p235 = scmp.ne.s32.totalorder %s220, %s234
      %p236 = scmp.eq.s32.totalorder %s42, 0
      %p237 = por %p235, %p236
      %s239 = sadd.s32 %s238, 1
      %p242 = scmp.eq.s32.totalorder %s36, 1
      %p243 = scmp.ne.s32.totalorder %s238, %s240
      %p244 = scmp.eq.s32.totalorder %s36, 0
      %p245 = por %p243, %p244
      %p246 = scmp.ne.s32.totalorder %s238, %s240
      %p247 = scmp.eq.s32.totalorder %s41, 1
      %p248 = por %p246, %p247
      %p249 = scmp.ne.s32.totalorder %s240, %s241
      %p250 = scmp.eq.s32.totalorder %s41, 0
      %p251 = por %p249, %p250
      %p252 = scmp.ne.s32.totalorder %s240, %s241
      %p253 = scmp.eq.s32.totalorder %s42, 1
      %p254 = por %p252, %p253
      %p256 = scmp.ne.s32.totalorder %s241, %s255
      %p257 = scmp.eq.s32.totalorder %s42, 0
      %p258 = por %p256, %p257
      %s260 = sadd.s32 %s259, 1
      %p263 = scmp.eq.s32.totalorder %s36, 1
      %p264 = scmp.ne.s32.totalorder %s259, %s261
      %p265 = scmp.eq.s32.totalorder %s36, 0
      %p266 = por %p264, %p265
      %p267 = scmp.ne.s32.totalorder %s259, %s261
      %p268 = scmp.eq.s32.totalorder %s41, 1
      %p269 = por %p267, %p268
      %p270 = scmp.ne.s32.totalorder %s261, %s262
      %p271 = scmp.eq.s32.totalorder %s41, 0
      %p272 = por %p270, %p271
      %p273 = scmp.ne.s32.totalorder %s261, %s262
      %p274 = scmp.eq.s32.totalorder %s42, 1
      %p275 = por %p273, %p274
      %p277 = scmp.ne.s32.totalorder %s262, %s276
      %p278 = scmp.eq.s32.totalorder %s42, 0
      %p279 = por %p277, %p278
      %s281 = sadd.s32 %s280, 1
      %p284 = scmp.eq.s32.totalorder %s36, 1
      %p285 = scmp.ne.s32.totalorder %s280, %s282
      %p286 = scmp.eq.s32.totalorder %s36, 0
      %p287 = por %p285, %p286
      %p288 = scmp.ne.s32.totalorder %s280, %s282
      %p289 = scmp.eq.s32.totalorder %s41, 1
      %p290 = por %p288, %p289
      %p291 = scmp.ne.s32.totalorder %s282, %s283
      %p292 = scmp.eq.s32.totalorder %s41, 0
      %p293 = por %p291, %p292
      %p294 = scmp.ne.s32.totalorder %s282, %s283
      %p295 = scmp.eq.s32.totalorder %s42, 1
      %p296 = por %p294, %p295
      %p298 = scmp.ne.s32.totalorder %s283, %s297
      %p299 = scmp.eq.s32.totalorder %s42, 0
      %p300 = por %p298, %p299
      %s302 = sadd.s32 %s301, 1
      %p305 = scmp.eq.s32.totalorder %s36, 1
      %p306 = scmp.ne.s32.totalorder %s301, %s303
      %p307 = scmp.eq.s32.totalorder %s36, 0
      %p308 = por %p306, %p307
      %p309 = scmp.ne.s32.totalorder %s301, %s303
      %p310 = scmp.eq.s32.totalorder %s41, 1
      %p311 = por %p309, %p310
      %p312 = scmp.ne.s32.totalorder %s303, %s304
      %p313 = scmp.eq.s32.totalorder %s41, 0
      %p314 = por %p312, %p313
      %p315 = scmp.ne.s32.totalorder %s303, %s304
      %p316 = scmp.eq.s32.totalorder %s42, 1
      %p317 = por %p315, %p316
      %p319 = scmp.ne.s32.totalorder %s304, %s318
      %p320 = scmp.eq.s32.totalorder %s42, 0
      %p321 = por %p319, %p320
      %s323 = sadd.s32 %s322, 1
      %p326 = scmp.eq.s32.totalorder %s36, 1
      %p327 = scmp.ne.s32.totalorder %s322, %s324
      %p328 = scmp.eq.s32.totalorder %s36, 0
      %p329 = por %p327, %p328
      %p330 = scmp.ne.s32.totalorder %s322, %s324
      %p331 = scmp.eq.s32.totalorder %s41, 1
      %p332 = por %p330, %p331
      %p333 = scmp.ne.s32.totalorder %s324, %s325
      %p334 = scmp.eq.s32.totalorder %s41, 0
      %p335 = por %p333, %p334
      %p336 = scmp.ne.s32.totalorder %s324, %s325
      %p337 = scmp.eq.s32.totalorder %s42, 1
      %p338 = por %p336, %p337
      %p340 = scmp.ne.s32.totalorder %s325, %s339
      %p341 = scmp.eq.s32.totalorder %s42, 0
      %p342 = por %p340, %p341
      %s344 = sadd.s32 %s343, 1
      %p347 = scmp.eq.s32.totalorder %s36, 1
      %p348 = scmp.ne.s32.totalorder %s343, %s345
      %p349 = scmp.eq.s32.totalorder %s36, 0
      %p350 = por %p348, %p349
      %p351 = scmp.ne.s32.totalorder %s343, %s345
      %p352 = scmp.eq.s32.totalorder %s41, 1
      %p353 = por %p351, %p352
      %p354 = scmp.ne.s32.totalorder %s345, %s346
      %p355 = scmp.eq.s32.totalorder %s41, 0
      %p356 = por %p354, %p355
      %p357 = scmp.ne.s32.totalorder %s345, %s346
      %p358 = scmp.eq.s32.totalorder %s42, 1
      %p359 = por %p357, %p358
      %p361 = scmp.ne.s32.totalorder %s346, %s360
      %p362 = scmp.eq.s32.totalorder %s42, 0
      %p363 = por %p361, %p362
      %s365 = sadd.s32 %s364, 1
      %p368 = scmp.eq.s32.totalorder %s36, 1
      %p369 = scmp.ne.s32.totalorder %s364, %s366
      %p370 = scmp.eq.s32.totalorder %s36, 0
      %p371 = por %p369, %p370
      %p372 = scmp.ne.s32.totalorder %s364, %s366
      %p373 = scmp.eq.s32.totalorder %s41, 1
      %p374 = por %p372, %p373
      %p375 = scmp.ne.s32.totalorder %s366, %s367
      %p376 = scmp.eq.s32.totalorder %s41, 0
      %p377 = por %p375, %p376
      %p378 = scmp.ne.s32.totalorder %s366, %s367
      %p379 = scmp.eq.s32.totalorder %s42, 1
      %p380 = por %p378, %p379
      %p382 = scmp.ne.s32.totalorder %s367, %s381
      %p383 = scmp.eq.s32.totalorder %s42, 0
      %p384 = por %p382, %p383
      %s386 = sadd.s32 %s385, 1
      %p389 = scmp.eq.s32.totalorder %s36, 1
      %p390 = scmp.ne.s32.totalorder %s385, %s387
      %p391 = scmp.eq.s32.totalorder %s36, 0
      %p392 = por %p390, %p391
      %p393 = scmp.ne.s32.totalorder %s385, %s387
      %p394 = scmp.eq.s32.totalorder %s41, 1
      %p395 = por %p393, %p394
      %p396 = scmp.ne.s32.totalorder %s387, %s388
      %p397 = scmp.eq.s32.totalorder %s41, 0
      %p398 = por %p396, %p397
      %p399 = scmp.ne.s32.totalorder %s387, %s388
      %p400 = scmp.eq.s32.totalorder %s42, 1
      %p401 = por %p399, %p400
      %p403 = scmp.ne.s32.totalorder %s388, %s402
      %p404 = scmp.eq.s32.totalorder %s42, 0
      %p405 = por %p403, %p404
      %s407 = sadd.s32 %s406, 1
      %p410 = scmp.eq.s32.totalorder %s36, 1
      %p411 = scmp.ne.s32.totalorder %s406, %s408
      %p412 = scmp.eq.s32.totalorder %s36, 0
      %p413 = por %p411, %p412
      %p414 = scmp.ne.s32.totalorder %s406, %s408
      %p415 = scmp.eq.s32.totalorder %s41, 1
      %p416 = por %p414, %p415
      %p417 = scmp.ne.s32.totalorder %s408, %s409
      %p418 = scmp.eq.s32.totalorder %s41, 0
      %p419 = por %p417, %p418
      %p420 = scmp.ne.s32.totalorder %s408, %s409
      %p421 = scmp.eq.s32.totalorder %s42, 1
      %p422 = por %p420, %p421
      %p424 = scmp.ne.s32.totalorder %s409, %s423
      %p425 = scmp.eq.s32.totalorder %s42, 0
      %p426 = por %p424, %p425
      %s428 = sadd.s32 %s427, 1
      %p431 = scmp.eq.s32.totalorder %s36, 1
      %p432 = scmp.ne.s32.totalorder %s427, %s429
      %p433 = scmp.eq.s32.totalorder %s36, 0
      %p434 = por %p432, %p433
      %p435 = scmp.ne.s32.totalorder %s427, %s429
      %p436 = scmp.eq.s32.totalorder %s41, 1
      %p437 = por %p435, %p436
      %p438 = scmp.ne.s32.totalorder %s429, %s430
      %p439 = scmp.eq.s32.totalorder %s41, 0
      %p440 = por %p438, %p439
      %p441 = scmp.ne.s32.totalorder %s429, %s430
      %p442 = scmp.eq.s32.totalorder %s42, 1
      %p443 = por %p441, %p442
      %p445 = scmp.ne.s32.totalorder %s430, %s444
      %p446 = scmp.eq.s32.totalorder %s42, 0
      %p447 = por %p445, %p446
      %s449 = sadd.s32 %s448, 1
      %p452 = scmp.eq.s32.totalorder %s36, 1
      %p453 = scmp.ne.s32.totalorder %s448, %s450
      %p454 = scmp.eq.s32.totalorder %s36, 0
      %p455 = por %p453, %p454
      %p456 = scmp.ne.s32.totalorder %s448, %s450
      %p457 = scmp.eq.s32.totalorder %s41, 1
      %p458 = por %p456, %p457
      %p459 = scmp.ne.s32.totalorder %s450, %s451
      %p460 = scmp.eq.s32.totalorder %s41, 0
      %p461 = por %p459, %p460
      %p462 = scmp.ne.s32.totalorder %s450, %s451
      %p463 = scmp.eq.s32.totalorder %s42, 1
      %p464 = por %p462, %p463
      %p466 = scmp.ne.s32.totalorder %s451, %s465
      %p467 = scmp.eq.s32.totalorder %s42, 0
      %p468 = por %p466, %p467
      %s469 = ssub.s32 %s36, %s43
      %p470 = scmp.eq.s32.totalorder %s469, 0
      %s472 = sadd.s32 %s471, 1
      %s473 = scalar_select %p470, %s471, %s472
      %p476 = pneg %p470
      %p477 = scmp.eq.s32.totalorder %s36, 1
      %p478 = por %p476, %p477
      %p479 = scmp.ne.s32.totalorder %s471, %s474
      %p480 = scmp.eq.s32.totalorder %s36, 0
      %p481 = por %p479, %p480
      %p482 = scmp.ne.s32.totalorder %s471, %s474
      %p483 = scmp.eq.s32.totalorder %s41, 1
      %p484 = por %p482, %p483
      %p485 = scmp.ne.s32.totalorder %s474, %s475
      %p486 = scmp.eq.s32.totalorder %s41, 0
      %p487 = por %p485, %p486
      %p488 = scmp.ne.s32.totalorder %s474, %s475
      %p489 = scmp.eq.s32.totalorder %s42, 1
      %p490 = por %p488, %p489
      %p492 = scmp.ne.s32.totalorder %s475, %s491
      %p493 = scmp.eq.s32.totalorder %s42, 0
      %p494 = por %p492, %p493
      %p495 = scmp.le.s32.totalorder 1, %s36
      %p496 = scmp.lt.s32.totalorder %s36, 3
      %p497 = pnand %p495, %p496
      %p498 = pneg %p497
      // Predicated region
      $region9: #{tpu_custom_call.1} parent=5 // pred_check
        _
      $region10: #{tpu_custom_call.1} parent=5 // pred_check_branch
        %500 = sbr.rel (%p497) target = $region12
      $region11: #{tpu_custom_call.1} parent=5 // pred_region
        %s501 = ssub.s32 %s36, 1
        // Predicated region
        $region13: #{tpu_custom_call.1} parent=11 // pred_check
          %p502 = pneg %p83
        $region14: #{tpu_custom_call.1} parent=11 // pred_check_branch
          %504 = sbr.rel (%p502) target = $region16
        $region15: #{tpu_custom_call.1} parent=11 // pred_region
          %s506 = ssub.s32 2048, 2048
          %507 = vsyncadd [#allocation8], %s506
          %s508 = sshll.u32 [#allocation7], 4
          %s509 = int_to_ptr.vmem [resolvable:$true] %s508
          %514 = dma.hbm_to_vmem [thread:$0]  %s1, 2048, %s509, [#allocation8], 128, 128, 8
        $region16: #{tpu_custom_call.1} parent=11 // pred_fallthru
          _
        // Predicated region
        $region17: #{tpu_custom_call.1} parent=11 // pred_check
          %p515 = pneg %p104
        $region18: #{tpu_custom_call.1} parent=11 // pred_check_branch
          %517 = sbr.rel (%p515) target = $region20
        $region19: #{tpu_custom_call.1} parent=11 // pred_region
          _
        $region20: #{tpu_custom_call.1} parent=11 // pred_fallthru
          _
        // Predicated region
        $region21: #{tpu_custom_call.1} parent=11 // pred_check
          %p518 = pneg %p125
        $region22: #{tpu_custom_call.1} parent=11 // pred_check_branch
          %520 = sbr.rel (%p518) target = $region24
        $region23: #{tpu_custom_call.1} parent=11 // pred_region
          %s522 = ssub.s32 512, 512
          %523 = vsyncadd [#allocation8], %s522
          %s524 = sshll.u32 [#allocation9], 4
          %s525 = int_to_ptr.vmem [resolvable:$true] %s524
          %530 = dma.hbm_to_vmem [thread:$0]  %s3, 512, %s525, [#allocation8], 256, 256, 16
        $region24: #{tpu_custom_call.1} parent=11 // pred_fallthru
          _
        // Predicated region
        $region25: #{tpu_custom_call.1} parent=11 // pred_check
          %p531 = pneg %p146
        $region26: #{tpu_custom_call.1} parent=11 // pred_check_branch
          %533 = sbr.rel (%p531) target = $region28
        $region27: #{tpu_custom_call.1} parent=11 // pred_region
          %s535 = ssub.s32 16, 16
          %536 = vsyncadd [#allocation11], %s535
          %s538 = sshll.u32 [#allocation10], 4
          %s539 = int_to_ptr.vmem [resolvable:$true] %s538
          %541 = dma.hbm_to_vmem [thread:$0]  %s4, 16, %s539, [#allocation11]
        $region28: #{tpu_custom_call.1} parent=11 // pred_fallthru
          _
        // Predicated region
        $region29: #{tpu_custom_call.1} parent=11 // pred_check
          %p542 = pneg %p167
        $region30: #{tpu_custom_call.1} parent=11 // pred_check_branch
          %544 = sbr.rel (%p542) target = $region32
        $region31: #{tpu_custom_call.1} parent=11 // pred_region
          %s546 = ssub.s32 64, 64
          %547 = vsyncadd [#allocation11], %s546
          %s549 = sshll.u32 [#allocation12], 4
          %s550 = int_to_ptr.vmem [resolvable:$true] %s549
          %552 = dma.hbm_to_vmem [thread:$0]  %s5, 64, %s550, [#allocation11]
        $region32: #{tpu_custom_call.1} parent=11 // pred_fallthru
          _
        // Predicated region
        $region33: #{tpu_custom_call.1} parent=11 // pred_check
          %p553 = pneg %p188
        $region34: #{tpu_custom_call.1} parent=11 // pred_check_branch
          %555 = sbr.rel (%p553) target = $region36
        $region35: #{tpu_custom_call.1} parent=11 // pred_region
          _
        $region36: #{tpu_custom_call.1} parent=11 // pred_fallthru
          _
        // Predicated region
        $region37: #{tpu_custom_call.1} parent=11 // pred_check
          %p556 = pneg %p209
        $region38: #{tpu_custom_call.1} parent=11 // pred_check_branch
          %558 = sbr.rel (%p556) target = $region40
        $region39: #{tpu_custom_call.1} parent=11 // pred_region
          _
        $region40: #{tpu_custom_call.1} parent=11 // pred_fallthru
          _
        // Predicated region
        $region41: #{tpu_custom_call.1} parent=11 // pred_check
          %p559 = pneg %p230
        $region42: #{tpu_custom_call.1} parent=11 // pred_check_branch
          %561 = sbr.rel (%p559) target = $region44
        $region43: #{tpu_custom_call.1} parent=11 // pred_region
          _
        $region44: #{tpu_custom_call.1} parent=11 // pred_fallthru
          _
        // Predicated region
        $region45: #{tpu_custom_call.1} parent=11 // pred_check
          %p562 = pneg %p251
        $region46: #{tpu_custom_call.1} parent=11 // pred_check_branch
          %564 = sbr.rel (%p562) target = $region48
        $region47: #{tpu_custom_call.1} parent=11 // pred_region
          %s566 = ssub.s32 16, 16
          %567 = vsyncadd [#allocation14], %s566
          %s569 = sshll.u32 [#allocation13], 4
          %s570 = int_to_ptr.vmem [resolvable:$true] %s569
          %572 = dma.hbm_to_vmem [thread:$0]  %s9, 16, %s570, [#allocation14]
        $region48: #{tpu_custom_call.1} parent=11 // pred_fallthru
          _
        // Predicated region
        $region49: #{tpu_custom_call.1} parent=11 // pred_check
          %p573 = pneg %p272
        $region50: #{tpu_custom_call.1} parent=11 // pred_check_branch
          %575 = sbr.rel (%p573) target = $region52
        $region51: #{tpu_custom_call.1} parent=11 // pred_region
          %s577 = ssub.s32 16, 16
          %578 = vsyncadd [#allocation14], %s577
          %s580 = sshll.u32 [#allocation15], 4
          %s581 = int_to_ptr.vmem [resolvable:$true] %s580
          %583 = dma.hbm_to_vmem [thread:$0]  %s10, 16, %s581, [#allocation14]
        $region52: #{tpu_custom_call.1} parent=11 // pred_fallthru
          _
        // Predicated region
        $region53: #{tpu_custom_call.1} parent=11 // pred_check
          %p584 = pneg %p293
        $region54: #{tpu_custom_call.1} parent=11 // pred_check_branch
          %586 = sbr.rel (%p584) target = $region56
        $region55: #{tpu_custom_call.1} parent=11 // pred_region
          %s588 = ssub.s32 16, 16
          %589 = vsyncadd [#allocation17], %s588
          %s591 = sshll.u32 [#allocation16], 4
          %s592 = int_to_ptr.vmem [resolvable:$true] %s591
          %594 = dma.hbm_to_vmem [thread:$0]  %s11, 16, %s592, [#allocation17]
        $region56: #{tpu_custom_call.1} parent=11 // pred_fallthru
          _
        // Predicated region
        $region57: #{tpu_custom_call.1} parent=11 // pred_check
          %p595 = pneg %p314
        $region58: #{tpu_custom_call.1} parent=11 // pred_check_branch
          %597 = sbr.rel (%p595) target = $region60
        $region59: #{tpu_custom_call.1} parent=11 // pred_region
          _
        $region60: #{tpu_custom_call.1} parent=11 // pred_fallthru
          _
        // Predicated region
        $region61: #{tpu_custom_call.1} parent=11 // pred_check
          %p598 = pneg %p335
        $region62: #{tpu_custom_call.1} parent=11 // pred_check_branch
          %600 = sbr.rel (%p598) target = $region64
        $region63: #{tpu_custom_call.1} parent=11 // pred_region
          %s602 = ssub.s32 16, 16
          %603 = vsyncadd [#allocation17], %s602
          %s605 = sshll.u32 [#allocation18], 4
          %s606 = int_to_ptr.vmem [resolvable:$true] %s605
          %608 = dma.hbm_to_vmem [thread:$0]  %s13, 16, %s606, [#allocation17]
        $region64: #{tpu_custom_call.1} parent=11 // pred_fallthru
          _
        // Predicated region
        $region65: #{tpu_custom_call.1} parent=11 // pred_check
          %p609 = pneg %p356
        $region66: #{tpu_custom_call.1} parent=11 // pred_check_branch
          %611 = sbr.rel (%p609) target = $region68
        $region67: #{tpu_custom_call.1} parent=11 // pred_region
          _
        $region68: #{tpu_custom_call.1} parent=11 // pred_fallthru
          _
        // Predicated region
        $region69: #{tpu_custom_call.1} parent=11 // pred_check
          %p612 = pneg %p377
        $region70: #{tpu_custom_call.1} parent=11 // pred_check_branch
          %614 = sbr.rel (%p612) target = $region72
        $region71: #{tpu_custom_call.1} parent=11 // pred_region
          _
        $region72: #{tpu_custom_call.1} parent=11 // pred_fallthru
          _
        // Predicated region
        $region73: #{tpu_custom_call.1} parent=11 // pred_check
          %p615 = pneg %p398
        $region74: #{tpu_custom_call.1} parent=11 // pred_check_branch
          %617 = sbr.rel (%p615) target = $region76
        $region75: #{tpu_custom_call.1} parent=11 // pred_region
          _
        $region76: #{tpu_custom_call.1} parent=11 // pred_fallthru
          _
        // Predicated region
        $region77: #{tpu_custom_call.1} parent=11 // pred_check
          %p618 = pneg %p419
        $region78: #{tpu_custom_call.1} parent=11 // pred_check_branch
          %620 = sbr.rel (%p618) target = $region80
        $region79: #{tpu_custom_call.1} parent=11 // pred_region
          _
        $region80: #{tpu_custom_call.1} parent=11 // pred_fallthru
          _
        // Predicated region
        $region81: #{tpu_custom_call.1} parent=11 // pred_check
          %p621 = pneg %p440
        $region82: #{tpu_custom_call.1} parent=11 // pred_check_branch
          %623 = sbr.rel (%p621) target = $region84
        $region83: #{tpu_custom_call.1} parent=11 // pred_region
          _
        $region84: #{tpu_custom_call.1} parent=11 // pred_fallthru
          _
        // Predicated region
        $region85: #{tpu_custom_call.1} parent=11 // pred_check
          %p624 = pneg %p461
        $region86: #{tpu_custom_call.1} parent=11 // pred_check_branch
          %626 = sbr.rel (%p624) target = $region88
        $region87: #{tpu_custom_call.1} parent=11 // pred_region
          _
        $region88: #{tpu_custom_call.1} parent=11 // pred_fallthru
          _
      $region12: #{tpu_custom_call.1} parent=5 // pred_fallthru
        _
      %p627 = scmp.lt.s32.totalorder %s36, 2
      // Predicated region
      $region89: #{tpu_custom_call.1} parent=5 // pred_check
        %p628 = pneg %p627
      $region90: #{tpu_custom_call.1} parent=5 // pred_check_branch
        %630 = sbr.rel (%p628) target = $region92
      $region91: #{tpu_custom_call.1} parent=5 // pred_region
        // Predicated region
        $region93: #{tpu_custom_call.1} parent=91 // pred_check
          %p631 = pneg %p56
        $region94: #{tpu_custom_call.1} parent=91 // pred_check_branch
          %633 = sbr.rel (%p631) target = $region96
        $region95: #{tpu_custom_call.1} parent=91 // pred_region
          %s634 = sand.u32 %s46, 1
          %s635 = scalar_lea.sflag [#allocation5], %s634
          %s636 = sand.u32 %s46, 1
          %s637 = smul.addr %s636, 8
          %s638 = scalar_lea.vmem [#allocation4], %s637
          %s640 = ssub.s32 128, 128
          %641 = vsyncadd %s635, %s640
          %s642 = smul.addr %s36, 128
          %s643 = scalar_lea.hbm %s0, %s642
          %s645 = sshll.u32 %s638, 4
          %s646 = int_to_ptr.vmem [resolvable:$true] %s645
          %648 = dma.hbm_to_vmem [thread:$0]  %s643, 128, %s646, %s635
        $region96: #{tpu_custom_call.1} parent=91 // pred_fallthru
          _
      $region92: #{tpu_custom_call.1} parent=5 // pred_fallthru
        _
      %p649 = scmp.le.s32.totalorder 1, %s36
      %p650 = scmp.lt.s32.totalorder %s36, 3
      %p651 = pnand %p649, %p650
      %p652 = pneg %p651
      // Predicated region
      $region97: #{tpu_custom_call.1} parent=5 // pred_check
        _
      $region98: #{tpu_custom_call.1} parent=5 // pred_check_branch
        %654 = sbr.rel (%p651) target = $region100
      $region99: #{tpu_custom_call.1} parent=5 // pred_region
        %s655 = ssub.s32 %s36, 1
        %s656 = sand.u32 %s49, 1
        %s657 = scalar_lea.sflag [#allocation5], %s656
        %s658 = sand.u32 %s49, 1
        %s659 = smul.addr %s658, 8
        %s660 = scalar_lea.vmem [#allocation4], %s659
        // Predicated region
        $region101: #{tpu_custom_call.1} parent=99 // pred_check
          %p661 = pneg %p62
        $region102: #{tpu_custom_call.1} parent=99 // pred_check_branch
          %663 = sbr.rel (%p661) target = $region104
        $region103: #{tpu_custom_call.1} parent=99 // pred_region
          %664 = dma.done %s657, 128
        $region104: #{tpu_custom_call.1} parent=99 // pred_fallthru
          _
        // Predicated region
        $region105: #{tpu_custom_call.1} parent=99 // pred_check
          %p665 = pneg %p83
        $region106: #{tpu_custom_call.1} parent=99 // pred_check_branch
          %667 = sbr.rel (%p665) target = $region108
        $region107: #{tpu_custom_call.1} parent=99 // pred_region
          %668 = dma.done [#allocation8], 2048
        $region108: #{tpu_custom_call.1} parent=99 // pred_fallthru
          _
        // Predicated region
        $region109: #{tpu_custom_call.1} parent=99 // pred_check
          %p669 = pneg %p125
        $region110: #{tpu_custom_call.1} parent=99 // pred_check_branch
          %671 = sbr.rel (%p669) target = $region112
        $region111: #{tpu_custom_call.1} parent=99 // pred_region
          %672 = dma.done [#allocation8], 512
        $region112: #{tpu_custom_call.1} parent=99 // pred_fallthru
          _
        // Predicated region
        $region113: #{tpu_custom_call.1} parent=99 // pred_check
          %p673 = pneg %p146
        $region114: #{tpu_custom_call.1} parent=99 // pred_check_branch
          %675 = sbr.rel (%p673) target = $region116
        $region115: #{tpu_custom_call.1} parent=99 // pred_region
          %676 = dma.done [#allocation11], 16
        $region116: #{tpu_custom_call.1} parent=99 // pred_fallthru
          _
        // Predicated region
        $region117: #{tpu_custom_call.1} parent=99 // pred_check
          %p677 = pneg %p167
        $region118: #{tpu_custom_call.1} parent=99 // pred_check_branch
          %679 = sbr.rel (%p677) target = $region120
        $region119: #{tpu_custom_call.1} parent=99 // pred_region
          %680 = dma.done [#allocation11], 64
        $region120: #{tpu_custom_call.1} parent=99 // pred_fallthru
          _
        // Predicated region
        $region121: #{tpu_custom_call.1} parent=99 // pred_check
          %p681 = pneg %p251
        $region122: #{tpu_custom_call.1} parent=99 // pred_check_branch
          %683 = sbr.rel (%p681) target = $region124
        $region123: #{tpu_custom_call.1} parent=99 // pred_region
          %684 = dma.done [#allocation14], 16
        $region124: #{tpu_custom_call.1} parent=99 // pred_fallthru
          _
        // Predicated region
        $region125: #{tpu_custom_call.1} parent=99 // pred_check
          %p685 = pneg %p272
        $region126: #{tpu_custom_call.1} parent=99 // pred_check_branch
          %687 = sbr.rel (%p685) target = $region128
        $region127: #{tpu_custom_call.1} parent=99 // pred_region
          %688 = dma.done [#allocation14], 16
        $region128: #{tpu_custom_call.1} parent=99 // pred_fallthru
          _
        // Predicated region
        $region129: #{tpu_custom_call.1} parent=99 // pred_check
          %p689 = pneg %p293
        $region130: #{tpu_custom_call.1} parent=99 // pred_check_branch
          %691 = sbr.rel (%p689) target = $region132
        $region131: #{tpu_custom_call.1} parent=99 // pred_region
          %692 = dma.done [#allocation17], 16
        $region132: #{tpu_custom_call.1} parent=99 // pred_fallthru
          _
        // Predicated region
        $region133: #{tpu_custom_call.1} parent=99 // pred_check
          %p693 = pneg %p335
        $region134: #{tpu_custom_call.1} parent=99 // pred_check_branch
          %695 = sbr.rel (%p693) target = $region136
        $region135: #{tpu_custom_call.1} parent=99 // pred_region
          %696 = dma.done [#allocation17], 16
        $region136: #{tpu_custom_call.1} parent=99 // pred_fallthru
          _
        %s697 = sand.u32 %s49, 1
        %s698 = scalar_lea.sflag [#allocation5], %s697
        %s699 = sand.u32 %s49, 1
        %s700 = smul.addr %s699, 8
        %s701 = scalar_lea.vmem [#allocation4], %s700
        %p702 = pneg %p62
        %p703 = pneg %p59
        %p704 = pneg %p83
        %p705 = pneg %p80
        %p706 = pneg %p104
        %p707 = pneg %p101
        %p708 = pneg %p125
        %p709 = pneg %p122
        %p710 = pneg %p146
        %p711 = pneg %p143
        %p712 = pneg %p167
        %p713 = pneg %p164
        %p714 = pneg %p188
        %p715 = pneg %p185
        %p716 = pneg %p209
        %p717 = pneg %p206
        %p718 = pneg %p230
        %p719 = pneg %p227
        %p720 = pneg %p251
        %p721 = pneg %p248
        %p722 = pneg %p272
        %p723 = pneg %p269
        %p724 = pneg %p293
        %p725 = pneg %p290
        %p726 = pneg %p314
        %p727 = pneg %p311
        %p728 = pneg %p335
        %p729 = pneg %p332
        %p730 = pneg %p356
        %p731 = pneg %p353
        %p732 = pneg %p377
        %p733 = pneg %p374
        %p734 = pneg %p398
        %p735 = pneg %p395
        %p736 = pneg %p419
        %p737 = pneg %p416
        %p738 = pneg %p440
        %p739 = pneg %p437
        %p740 = pneg %p461
        %p741 = pneg %p458
        %p742 = pneg %p487
        %p743 = pneg %p484
        %s744 = sand.u32 %s474, 1
        %s745 = scalar_lea.sflag [#allocation6], %s744
        %s746 = sand.u32 %s474, 1
        %s747 = smul.addr %s746, 4
        %s748 = scalar_lea.vmem [#allocation19], %s747
        %v750 = vld [vmem:[%s660] sm:$0xff]
        %v751 = vpack.c.bf16 %v750, %v750
        %v752 = vld [vmem:[#allocation7] sm:$0xff]
        %v753 = vld [vmem:[#allocation7 + $0x8] sm:$0xff]
        %v754 = vld [vmem:[#allocation7 + $0x10] sm:$0xff]
        %v755 = vld [vmem:[#allocation7 + $0x18] sm:$0xff]
        %v756 = vld [vmem:[#allocation7 + $0x20] sm:$0xff]
        %v757 = vld [vmem:[#allocation7 + $0x28] sm:$0xff]
        %v758 = vld [vmem:[#allocation7 + $0x30] sm:$0xff]
        %v759 = vld [vmem:[#allocation7 + $0x38] sm:$0xff]
        %v760 = vld [vmem:[#allocation7 + $0x40] sm:$0xff]
        %v761 = vld [vmem:[#allocation7 + $0x48] sm:$0xff]
        %v762 = vld [vmem:[#allocation7 + $0x50] sm:$0xff]
        %v763 = vld [vmem:[#allocation7 + $0x58] sm:$0xff]
        %v764 = vld [vmem:[#allocation7 + $0x60] sm:$0xff]
        %v765 = vld [vmem:[#allocation7 + $0x68] sm:$0xff]
        %v766 = vld [vmem:[#allocation7 + $0x70] sm:$0xff]
        %v767 = vld [vmem:[#allocation7 + $0x78] sm:$0xff]
        %v768 = vld [vmem:[%s2] sm:$0x3]
        %v770 = vlaneseq
        %v771 = vshrl.u32 %v770, 7
        %v772 = vsub.s32 0, %v771
        %v773 = vrot.slane %v768, %v772
        %v774 = vlaneseq
        %v775 = vshrl.u32 %v774, 7
        %v776 = vsub.s32 1, %v775
        %v777 = vrot.slane %v768, %v776
        %v796 = vunpack.c.l.b16 %v752
        %v797 = vunpack.c.h.b16 %v752
        %v798 = vunpack.c.l.b16 %v753
        %v799 = vunpack.c.h.b16 %v753
        %v800 = vunpack.c.l.b16 %v754
        %v801 = vunpack.c.h.b16 %v754
        %v802 = vunpack.c.l.b16 %v755
        %v803 = vunpack.c.h.b16 %v755
        %v804 = vunpack.c.l.b16 %v756
        %v805 = vunpack.c.h.b16 %v756
        %v806 = vunpack.c.l.b16 %v757
        %v807 = vunpack.c.h.b16 %v757
        %v808 = vunpack.c.l.b16 %v758
        %v809 = vunpack.c.h.b16 %v758
        %v810 = vunpack.c.l.b16 %v759
        %v811 = vunpack.c.h.b16 %v759
        %v812 = vunpack.c.l.b16 %v760
        %v813 = vunpack.c.h.b16 %v760
        %v814 = vunpack.c.l.b16 %v761
        %v815 = vunpack.c.h.b16 %v761
        %v816 = vunpack.c.l.b16 %v762
        %v817 = vunpack.c.h.b16 %v762
        %v818 = vunpack.c.l.b16 %v763
        %v819 = vunpack.c.h.b16 %v763
        %v820 = vunpack.c.l.b16 %v764
        %v821 = vunpack.c.h.b16 %v764
        %v822 = vunpack.c.l.b16 %v765
        %v823 = vunpack.c.h.b16 %v765
        %v824 = vunpack.c.l.b16 %v766
        %v825 = vunpack.c.h.b16 %v766
        %v826 = vunpack.c.l.b16 %v767
        %v827 = vunpack.c.h.b16 %v767
        %v828 = vpack.c.b16 %v798, %v796
        %v829 = vpack.c.b16 %v799, %v797
        %v830 = vpack.c.b16 %v802, %v800
        %v831 = vpack.c.b16 %v803, %v801
        %v832 = vpack.c.b16 %v806, %v804
        %v833 = vpack.c.b16 %v807, %v805
        %v834 = vpack.c.b16 %v810, %v808
        %v835 = vpack.c.b16 %v811, %v809
        %v836 = vpack.c.b16 %v814, %v812
        %v837 = vpack.c.b16 %v815, %v813
        %v838 = vpack.c.b16 %v818, %v816
        %v839 = vpack.c.b16 %v819, %v817
        %v840 = vpack.c.b16 %v822, %v820
        %v841 = vpack.c.b16 %v823, %v821
        %v842 = vpack.c.b16 %v826, %v824
        %v843 = vpack.c.b16 %v827, %v825
        %860 = vmatprep.subr.bf16.mxu0 %v829
        %861 = vmatpush1.bf16.msra.mxu0 %v828
        %862 = vmatprep.subr.bf16.mxu0 %v831
        %863 = vmatpush1.bf16.msra.mxu0 %v830
        %864 = vmatprep.subr.bf16.mxu0 %v833
        %865 = vmatpush1.bf16.msra.mxu0 %v832
        %866 = vmatprep.subr.bf16.mxu0 %v835
        %867 = vmatpush1.bf16.msra.mxu0 %v834
        %868 = vmatprep.subr.bf16.mxu0 %v837
        %869 = vmatpush1.bf16.msra.mxu0 %v836
        %870 = vmatprep.subr.bf16.mxu0 %v839
        %871 = vmatpush1.bf16.msra.mxu0 %v838
        %872 = vmatprep.subr.bf16.mxu0 %v841
        %873 = vmatpush1.bf16.msra.mxu0 %v840
        %874 = vmatprep.subr.bf16.mxu0 %v843
        %875 = vmatpush1.bf16.msra.mxu0 %v842
        %876 = vmatprep.subr.bf16.mxu0 0
        %877 = vmatpush1.bf16.msra.mxu0 0
        %878 = vmatprep.subr.bf16.mxu0 0
        %879 = vmatpush1.bf16.msra.mxu0 0
        %880 = vmatprep.subr.bf16.mxu0 0
        %881 = vmatpush1.bf16.msra.mxu0 0
        %882 = vmatprep.subr.bf16.mxu0 0
        %883 = vmatpush1.bf16.msra.mxu0 0
        %884 = vmatprep.subr.bf16.mxu0 0
        %885 = vmatpush1.bf16.msra.mxu0 0
        %886 = vmatprep.subr.bf16.mxu0 0
        %887 = vmatpush1.bf16.msra.mxu0 0
        %888 = vmatprep.subr.bf16.mxu0 0
        %889 = vmatpush1.bf16.msra.mxu0 0
        %890 = vmatprep.subr.bf16.mxu0 0
        %891 = vmatpush1.bf16.msra.mxu0 0
        %892 = vmatprep.mubr.bf16.mxu0 0
        %893 = vmatmul.mubr.bf16.gmra.mrb[0].mxu0 %v751
        %v894 = vpop.f32.mrb[0].mxu0
        %v895 = vadd.f32 %v773, %v894
        %v896 = vpop.f32.mrb[0].mxu0
        %v897 = vadd.f32 %v777, %v896
        %v898 = vpop.f32.mrb[0].mxu0
        %v899 = vpop.f32.mrb[0].mxu0
        %900 = vdwg.mxu0
        %v901 = vadd.f32 %v895, 3.0
        %v902 = vadd.f32 %v897, 3.0
        %v903 = vmax.f32 %v901, 0.0
        %v904 = vmax.f32 %v902, 0.0
        %v905 = vmin.f32 %v903, 6.0
        %v906 = vmin.f32 %v904, 6.0
        %v907 = vmul.f32 %v895, %v905
        %v908 = vmul.f32 %v897, %v906
        %v909 = vmul.f32 %v907, 0.16666667
        %v910 = vmul.f32 %v908, 0.16666667
        %911 = vst [vmem:[#allocation2] sm:$0xff] 0.0
        %912 = vst [vmem:[#allocation2 + $0x8] sm:$0xff] 0.0
        %vm913 = vcmask 523264
        %914 = vst.msk [vmem:[#allocation2 + $0x10] sm:$0xff] %vm913, 0.0
        %915 = vst [vmem:[#allocation2 + $0x18] sm:$0x3] 0.0
        %916 = vst [vmem:[#allocation2 + $0x20] sm:$0x3] 0.0
        %vm917 = vcmask 517120
        %918 = vst.msk [vmem:[#allocation2 + $0x28] sm:$0x3] %vm917, 0.0
        %v921 = vrot.slane %v909, 7
        %v922 = vrot.slane %v910, 7
        %923 = vrot.lane.b32.xlu0 %v921, 32
        %v924 = vpop.permute.xlu0 %923
        %925 = vrot.lane.b32.xlu0 %v922, 32
        %v926 = vpop.permute.xlu0 %925
        %vm927 = vcmask 261120
        %v928 = vsel %vm927, %v924, %v926
        %vm932 = vcmask 1047809
        %933 = vst.msk [vmem:[#allocation2] sm:$0xfe] %vm932, %v924
        %934 = vst [vmem:[#allocation2 + $0x8] sm:$0xfe] %v928
        %vm935 = vcmask 261121
        %936 = vst.msk [vmem:[#allocation2 + $0x10] sm:$0xfe] %vm935, %v926
        %vm937 = vcmask 1040640
        %938 = vst.msk [vmem:[#allocation2 + $0x18] sm:$0x1] %vm937, %v924
        %939 = vst [vmem:[#allocation2 + $0x20] sm:$0x1] %v928
        %vm940 = vcmask 253952
        %941 = vst.msk [vmem:[#allocation2 + $0x28] sm:$0x1] %vm940, %v926
        %v942 = vld [vmem:[#allocation2] sm:$0xff]
        %v943 = vld [vmem:[#allocation2 + $0x8] sm:$0xff]
        %v944 = vld [vmem:[#allocation2 + $0x10] sm:$0xff]
        %v945 = vld [vmem:[#allocation2 + $0x18] sm:$0x3]
        %v946 = vld [vmem:[#allocation2 + $0x20] sm:$0x3]
        %v947 = vld [vmem:[#allocation2 + $0x28] sm:$0x3]
        %v948 = vld [vmem:[#allocation9] sm:$0xff]
        %v949 = vld [vmem:[#allocation9 + $0x8] sm:$0xff]
        %v950 = vld [vmem:[#allocation9 + $0x10] sm:$0x1]
        %v951 = vld [vmem:[#allocation9 + $0x18] sm:$0x1]
        %v952 = vlaneseq
        %v953 = vshrl.u32 %v952, 7
        %v954 = vsub.s32 0, %v953
        %v955 = vrot.slane %v948, %v954
        %v956 = vlaneseq
        %v957 = vshrl.u32 %v956, 7
        %v958 = vsub.s32 0, %v957
        %v959 = vrot.slane %v949, %v958
        %v960 = vmul.f32 %v942, %v955
        %v961 = vmul.f32 %v943, %v959
        %v962 = vlaneseq
        %v963 = vshrl.u32 %v962, 7
        %v964 = vsub.s32 1, %v963
        %v965 = vrot.slane %v948, %v964
        %v966 = vlaneseq
        %v967 = vshrl.u32 %v966, 7
        %v968 = vsub.s32 1, %v967
        %v969 = vrot.slane %v949, %v968
        %972 = vrot.lane.b32.xlu0 %v965, 32
        %v973 = vpop.permute.xlu0 %972
        %974 = vrot.lane.b32.xlu0 %v969, 32
        %v975 = vpop.permute.xlu0 %974
        %v976 = vsel %vm927, %v973, %v975
        %v980 = vmul.f32 %v942, %v973
        %v981 = vmul.f32 %v943, %v976
        %v982 = vmul.f32 %v944, %v975
        %986 = vrot.lane.b32.xlu0 %v980, 96
        %v987 = vpop.permute.xlu0 %986
        %988 = vrot.lane.b32.xlu0 %v981, 96
        %v989 = vpop.permute.xlu0 %988
        %990 = vrot.lane.b32.xlu0 %v982, 96
        %v991 = vpop.permute.xlu0 %990
        %vm992 = vcmask 785408
        %v993 = vsel %vm992, %v987, %v989
        %v994 = vsel %vm992, %v989, %v991
        %v997 = vadd.f32 %v960, %v993
        %v998 = vadd.f32 %v961, %v994
        %v999 = vlaneseq
        %v1000 = vshrl.u32 %v999, 7
        %v1001 = vsub.s32 2, %v1000
        %v1002 = vrot.slane %v948, %v1001
        %v1003 = vlaneseq
        %v1004 = vshrl.u32 %v1003, 7
        %v1005 = vsub.s32 2, %v1004
        %v1006 = vrot.slane %v949, %v1005
        %1009 = vrot.lane.b32.xlu0 %v1002, 64
        %v1010 = vpop.permute.xlu0 %1009
        %1011 = vrot.lane.b32.xlu0 %v1006, 64
        %v1012 = vpop.permute.xlu0 %1011
        %v1013 = vsel %vm913, %v1010, %v1012
        %v1017 = vmul.f32 %v942, %v1010
        %v1018 = vmul.f32 %v943, %v1013
        %v1019 = vmul.f32 %v944, %v1012
        %1023 = vrot.lane.b32.xlu0 %v1017, 64
        %v1024 = vpop.permute.xlu0 %1023
        %1025 = vrot.lane.b32.xlu0 %v1018, 64
        %v1026 = vpop.permute.xlu0 %1025
        %1027 = vrot.lane.b32.xlu0 %v1019, 64
        %v1028 = vpop.permute.xlu0 %1027
        %v1029 = vsel %vm913, %v1024, %v1026
        %v1030 = vsel %vm913, %v1026, %v1028
        %v1033 = vadd.f32 %v997, %v1029
        %v1034 = vadd.f32 %v998, %v1030
        %v1035 = vlaneseq
        %v1036 = vshrl.u32 %v1035, 7
        %v1037 = vsub.s32 3, %v1036
        %v1038 = vrot.slane %v948, %v1037
        %v1039 = vlaneseq
        %v1040 = vshrl.u32 %v1039, 7
        %v1041 = vsub.s32 3, %v1040
        %v1042 = vrot.slane %v949, %v1041
        %v1043 = vmul.f32 %v942, %v1038
        %v1044 = vmul.f32 %v943, %v1042
        %v1045 = vmul.f32 %v945, %v1038
        %v1046 = vmul.f32 %v946, %v1042
        %vm1051 = vcmask 1046528
        %v1052 = vrot.slane %v1043, 1
        %v1053 = vrot.slane %v1045, 1
        %v1054 = vsel %vm1051, %v1052, %v1053
        %v1055 = vrot.slane %v1044, 1
        %v1056 = vrot.slane %v1046, 1
        %v1057 = vsel %vm1051, %v1055, %v1056
        %v1060 = vadd.f32 %v1033, %v1054
        %v1061 = vadd.f32 %v1034, %v1057
        %v1062 = vlaneseq
        %v1063 = vshrl.u32 %v1062, 7
        %v1064 = vsub.s32 4, %v1063
        %v1065 = vrot.slane %v948, %v1064
        %v1066 = vlaneseq
        %v1067 = vshrl.u32 %v1066, 7
        %v1068 = vsub.s32 4, %v1067
        %v1069 = vrot.slane %v949, %v1068
        %1072 = vrot.lane.b32.xlu0 %v1065, 32
        %v1073 = vpop.permute.xlu0 %1072
        %1074 = vrot.lane.b32.xlu0 %v1069, 32
        %v1075 = vpop.permute.xlu0 %1074
        %v1076 = vsel %vm927, %v1073, %v1075
        %v1080 = vmul.f32 %v942, %v1073
        %v1081 = vmul.f32 %v943, %v1076
        %v1082 = vmul.f32 %v944, %v1075
        %v1083 = vmul.f32 %v945, %v1073
        %v1084 = vmul.f32 %v946, %v1076
        %v1085 = vmul.f32 %v947, %v1075
        %v1092 = vrot.slane %v1080, 1
        %v1093 = vrot.slane %v1083, 1
        %v1094 = vsel %vm1051, %v1092, %v1093
        %v1095 = vrot.slane %v1081, 1
        %v1096 = vrot.slane %v1084, 1
        %v1097 = vsel %vm1051, %v1095, %v1096
        %v1098 = vrot.slane %v1082, 1
        %v1099 = vrot.slane %v1085, 1
        %v1100 = vsel %vm1051, %v1098, %v1099
        %1101 = vrot.lane.b32.xlu0 %v1094, 96
        %v1102 = vpop.permute.xlu0 %1101
        %1103 = vrot.lane.b32.xlu0 %v1097, 96
        %v1104 = vpop.permute.xlu0 %1103
        %1105 = vrot.lane.b32.xlu0 %v1100, 96
        %v1106 = vpop.permute.xlu0 %1105
        %v1107 = vsel %vm992, %v1102, %v1104
        %v1108 = vsel %vm992, %v1104, %v1106
        %v1111 = vadd.f32 %v1060, %v1107
        %v1112 = vadd.f32 %v1061, %v1108
        %v1113 = vlaneseq
        %v1114 = vshrl.u32 %v1113, 7
        %v1115 = vsub.s32 5, %v1114
        %v1116 = vrot.slane %v948, %v1115
        %v1117 = vlaneseq
        %v1118 = vshrl.u32 %v1117, 7
        %v1119 = vsub.s32 5, %v1118
        %v1120 = vrot.slane %v949, %v1119
        %1123 = vrot.lane.b32.xlu0 %v1116, 64
        %v1124 = vpop.permute.xlu0 %1123
        %1125 = vrot.lane.b32.xlu0 %v1120, 64
        %v1126 = vpop.permute.xlu0 %1125
        %v1127 = vsel %vm913, %v1124, %v1126
        %v1131 = vmul.f32 %v942, %v1124
        %v1132 = vmul.f32 %v943, %v1127
        %v1133 = vmul.f32 %v944, %v1126
        %v1134 = vmul.f32 %v945, %v1124
        %v1135 = vmul.f32 %v946, %v1127
        %v1136 = vmul.f32 %v947, %v1126
        %v1143 = vrot.slane %v1131, 1
        %v1144 = vrot.slane %v1134, 1
        %v1145 = vsel %vm1051, %v1143, %v1144
        %v1146 = vrot.slane %v1132, 1
        %v1147 = vrot.slane %v1135, 1
        %v1148 = vsel %vm1051, %v1146, %v1147
        %v1149 = vrot.slane %v1133, 1
        %v1150 = vrot.slane %v1136, 1
        %v1151 = vsel %vm1051, %v1149, %v1150
        %1152 = vrot.lane.b32.xlu0 %v1145, 64
        %v1153 = vpop.permute.xlu0 %1152
        %1154 = vrot.lane.b32.xlu0 %v1148, 64
        %v1155 = vpop.permute.xlu0 %1154
        %1156 = vrot.lane.b32.xlu0 %v1151, 64
        %v1157 = vpop.permute.xlu0 %1156
        %v1158 = vsel %vm913, %v1153, %v1155
        %v1159 = vsel %vm913, %v1155, %v1157
        %v1162 = vadd.f32 %v1111, %v1158
        %v1163 = vadd.f32 %v1112, %v1159
        %v1164 = vlaneseq
        %v1165 = vshrl.u32 %v1164, 7
        %v1166 = vsub.s32 6, %v1165
        %v1167 = vrot.slane %v948, %v1166
        %v1168 = vlaneseq
        %v1169 = vshrl.u32 %v1168, 7
        %v1170 = vsub.s32 6, %v1169
        %v1171 = vrot.slane %v949, %v1170
        %v1172 = vmul.f32 %v942, %v1167
        %v1173 = vmul.f32 %v943, %v1171
        %v1174 = vmul.f32 %v945, %v1167
        %v1175 = vmul.f32 %v946, %v1171
        %vm1180 = vcmask 1045504
        %v1181 = vrot.slane %v1172, 2
        %v1182 = vrot.slane %v1174, 2
        %v1183 = vsel %vm1180, %v1181, %v1182
        %v1184 = vrot.slane %v1173, 2
        %v1185 = vrot.slane %v1175, 2
        %v1186 = vsel %vm1180, %v1184, %v1185
        %v1189 = vadd.f32 %v1162, %v1183
        %v1190 = vadd.f32 %v1163, %v1186
        %v1191 = vlaneseq
        %v1192 = vshrl.u32 %v1191, 7
        %v1193 = vsub.s32 7, %v1192
        %v1194 = vrot.slane %v948, %v1193
        %v1195 = vlaneseq
        %v1196 = vshrl.u32 %v1195, 7
        %v1197 = vsub.s32 7, %v1196
        %v1198 = vrot.slane %v949, %v1197
        %1201 = vrot.lane.b32.xlu0 %v1194, 32
        %v1202 = vpop.permute.xlu0 %1201
        %1203 = vrot.lane.b32.xlu0 %v1198, 32
        %v1204 = vpop.permute.xlu0 %1203
        %v1205 = vsel %vm927, %v1202, %v1204
        %v1209 = vmul.f32 %v942, %v1202
        %v1210 = vmul.f32 %v943, %v1205
        %v1211 = vmul.f32 %v944, %v1204
        %v1212 = vmul.f32 %v945, %v1202
        %v1213 = vmul.f32 %v946, %v1205
        %v1214 = vmul.f32 %v947, %v1204
        %v1221 = vrot.slane %v1209, 2
        %v1222 = vrot.slane %v1212, 2
        %v1223 = vsel %vm1180, %v1221, %v1222
        %v1224 = vrot.slane %v1210, 2
        %v1225 = vrot.slane %v1213, 2
        %v1226 = vsel %vm1180, %v1224, %v1225
        %v1227 = vrot.slane %v1211, 2
        %v1228 = vrot.slane %v1214, 2
        %v1229 = vsel %vm1180, %v1227, %v1228
        %1230 = vrot.lane.b32.xlu0 %v1223, 96
        %v1231 = vpop.permute.xlu0 %1230
        %1232 = vrot.lane.b32.xlu0 %v1226, 96
        %v1233 = vpop.permute.xlu0 %1232
        %1234 = vrot.lane.b32.xlu0 %v1229, 96
        %v1235 = vpop.permute.xlu0 %1234
        %v1236 = vsel %vm992, %v1231, %v1233
        %v1237 = vsel %vm992, %v1233, %v1235
        %v1240 = vadd.f32 %v1189, %v1236
        %v1241 = vadd.f32 %v1190, %v1237
        %v1242 = vlaneseq
        %v1243 = vshrl.u32 %v1242, 7
        %v1244 = vsub.s32 0, %v1243
        %v1245 = vrot.slane %v950, %v1244
        %v1246 = vlaneseq
        %v1247 = vshrl.u32 %v1246, 7
        %v1248 = vsub.s32 0, %v1247
        %v1249 = vrot.slane %v951, %v1248
        %1252 = vrot.lane.b32.xlu0 %v1245, 64
        %v1253 = vpop.permute.xlu0 %1252
        %1254 = vrot.lane.b32.xlu0 %v1249, 64
        %v1255 = vpop.permute.xlu0 %1254
        %v1256 = vsel %vm913, %v1253, %v1255
        %v1260 = vmul.f32 %v942, %v1253
        %v1261 = vmul.f32 %v943, %v1256
        %v1262 = vmul.f32 %v944, %v1255
        %v1263 = vmul.f32 %v945, %v1253
        %v1264 = vmul.f32 %v946, %v1256
        %v1265 = vmul.f32 %v947, %v1255
        %v1272 = vrot.slane %v1260, 2
        %v1273 = vrot.slane %v1263, 2
        %v1274 = vsel %vm1180, %v1272, %v1273
        %v1275 = vrot.slane %v1261, 2
        %v1276 = vrot.slane %v1264, 2
        %v1277 = vsel %vm1180, %v1275, %v1276
        %v1278 = vrot.slane %v1262, 2
        %v1279 = vrot.slane %v1265, 2
        %v1280 = vsel %vm1180, %v1278, %v1279
        %1281 = vrot.lane.b32.xlu0 %v1274, 64
        %v1282 = vpop.permute.xlu0 %1281
        %1283 = vrot.lane.b32.xlu0 %v1277, 64
        %v1284 = vpop.permute.xlu0 %1283
        %1285 = vrot.lane.b32.xlu0 %v1280, 64
        %v1286 = vpop.permute.xlu0 %1285
        %v1287 = vsel %vm913, %v1282, %v1284
        %v1288 = vsel %vm913, %v1284, %v1286
        %v1291 = vadd.f32 %v1240, %v1287
        %v1292 = vadd.f32 %v1241, %v1288
        %v1293 = vld [vmem:[#allocation12] sm:$0xf]
        %vm1294 = vcmask 64512
        %v1296 = vsel %vm1294, %v1293, 0
        %1298 = vmatprep.subr.mxu0 %v1292
        %1299 = vmatpush1.msra.mxu0 %v1291
        %1300 = vmatprep.subr.mxu0 0.0
        %1301 = vmatpush1.msra.mxu0 0.0
        %1302 = vmatprep.subr.mxu0 0.0
        %1303 = vmatpush1.msra.mxu0 0.0
        %1304 = vmatprep.subr.mxu0 0.0
        %1305 = vmatpush1.msra.mxu0 0.0
        %1306 = vmatprep.subr.mxu0 0.0
        %1307 = vmatpush1.msra.mxu0 0.0
        %1308 = vmatprep.subr.mxu0 0.0
        %1309 = vmatpush1.msra.mxu0 0.0
        %1310 = vmatprep.subr.mxu0 0.0
        %1311 = vmatpush1.msra.mxu0 0.0
        %1312 = vmatprep.subr.mxu0 0.0
        %1313 = vmatpush1.msra.mxu0 0.0
        %1314 = vmatprep.subr.mxu0 0.0
        %1315 = vmatpush1.msra.mxu0 0.0
        %1316 = vmatprep.subr.mxu0 0.0
        %1317 = vmatpush1.msra.mxu0 0.0
        %1318 = vmatprep.subr.mxu0 0.0
        %1319 = vmatpush1.msra.mxu0 0.0
        %1320 = vmatprep.subr.mxu0 0.0
        %1321 = vmatpush1.msra.mxu0 0.0
        %1322 = vmatprep.subr.mxu0 0.0
        %1323 = vmatpush1.msra.mxu0 0.0
        %1324 = vmatprep.subr.mxu0 0.0
        %1325 = vmatpush1.msra.mxu0 0.0
        %1326 = vmatprep.subr.mxu0 0.0
        %1327 = vmatpush1.msra.mxu0 0.0
        %1328 = vmatprep.subr.mxu0 0.0
        %1329 = vmatpush1.msra.mxu0 0.0
        %1330 = vmatprep.subr.mxu0 0.0
        %1331 = vmatpush1.msra.mxu0 0.0
        %1332 = vmatprep.subr.mxu0 0.0
        %1333 = vmatpush1.msra.mxu0 0.0
        %1334 = vmatprep.subr.mxu0 0.0
        %1335 = vmatpush1.msra.mxu0 0.0
        %1336 = vmatprep.subr.mxu0 0.0
        %1337 = vmatpush1.msra.mxu0 0.0
        %1338 = vmatprep.subr.mxu0 0.0
        %1339 = vmatpush1.msra.mxu0 0.0
        %1340 = vmatprep.subr.mxu0 0.0
        %1341 = vmatpush1.msra.mxu0 0.0
        %1342 = vmatprep.subr.mxu0 0.0
        %1343 = vmatpush1.msra.mxu0 0.0
        %1344 = vmatprep.subr.mxu0 0.0
        %1345 = vmatpush1.msra.mxu0 0.0
        %1346 = vmatprep.subr.mxu0 0.0
        %1347 = vmatpush1.msra.mxu0 0.0
        %1348 = vmatprep.subr.mxu0 0.0
        %1349 = vmatpush1.msra.mxu0 0.0
        %1350 = vmatprep.subr.mxu0 0.0
        %1351 = vmatpush1.msra.mxu0 0.0
        %1352 = vmatprep.subr.mxu0 0.0
        %1353 = vmatpush1.msra.mxu0 0.0
        %1354 = vmatprep.subr.mxu0 0.0
        %1355 = vmatpush1.msra.mxu0 0.0
        %1356 = vmatprep.subr.mxu0 0.0
        %1357 = vmatpush1.msra.mxu0 0.0
        %1358 = vmatprep.subr.mxu0 0.0
        %1359 = vmatpush1.msra.mxu0 0.0
        %1360 = vmatprep.subr.mxu0 0.0
        %1361 = vmatpush1.msra.mxu0 0.0
        %1362 = vmatprep.mubr.f32.mxu0 0.0
        %1363 = vmatmul.mubr.f32.gmra.mrb[0].mxu0 %v1296
        %v1364 = vpop.f32.mrb[0].mxu0
        %v1365 = vadd.f32 0.0, %v1364
        %v1366 = vpop.f32.mrb[0].mxu0
        %v1367 = vadd.f32 0.0, %v1366
        %1368 = vdwg.mxu0
        %v1369 = vld [vmem:[%s6] sm:$0xff]
        %v1370 = vld [vmem:[%s6 + $0x8] sm:$0xff]
        %v1371 = vld [vmem:[%s6 + $0x10] sm:$0xff]
        %v1372 = vld [vmem:[%s6 + $0x18] sm:$0xff]
        %v1373 = vld [vmem:[%s6 + $0x20] sm:$0xff]
        %v1374 = vld [vmem:[%s6 + $0x28] sm:$0xff]
        %v1375 = vld [vmem:[%s6 + $0x30] sm:$0xff]
        %v1376 = vld [vmem:[%s6 + $0x38] sm:$0xff]
        %v1377 = vld [vmem:[%s6 + $0x40] sm:$0xff]
        %v1378 = vld [vmem:[%s6 + $0x48] sm:$0xff]
        %v1379 = vld [vmem:[%s6 + $0x50] sm:$0xff]
        %v1380 = vld [vmem:[%s6 + $0x58] sm:$0xff]
        %v1381 = vld [vmem:[%s6 + $0x60] sm:$0xff]
        %v1382 = vld [vmem:[%s6 + $0x68] sm:$0xff]
        %v1383 = vld [vmem:[%s6 + $0x70] sm:$0xff]
        %v1384 = vld [vmem:[%s6 + $0x78] sm:$0xff]
        %v1385 = vld [vmem:[%s6 + $0x80] sm:$0xff]
        %v1386 = vld [vmem:[%s6 + $0x88] sm:$0xff]
        %v1387 = vld [vmem:[%s6 + $0x90] sm:$0xff]
        %v1388 = vld [vmem:[%s6 + $0x98] sm:$0xff]
        %v1389 = vld [vmem:[%s6 + $0xa0] sm:$0xff]
        %v1390 = vld [vmem:[%s6 + $0xa8] sm:$0xff]
        %v1391 = vld [vmem:[%s6 + $0xb0] sm:$0xff]
        %v1392 = vld [vmem:[%s6 + $0xb8] sm:$0xff]
        %v1393 = vld [vmem:[%s6 + $0xc0] sm:$0xff]
        %v1394 = vld [vmem:[%s6 + $0xc8] sm:$0xff]
        %v1395 = vld [vmem:[%s6 + $0xd0] sm:$0xff]
        %v1396 = vld [vmem:[%s6 + $0xd8] sm:$0xff]
        %v1397 = vld [vmem:[%s6 + $0xe0] sm:$0xff]
        %v1398 = vld [vmem:[%s6 + $0xe8] sm:$0xff]
        %v1399 = vld [vmem:[%s6 + $0xf0] sm:$0xff]
        %v1400 = vld [vmem:[%s6 + $0xf8] sm:$0xff]
        %v1401 = vld [vmem:[#allocation10] sm:$0x1]
        %v1403 = vlaneseq
        %v1404 = vshrl.u32 %v1403, 7
        %v1405 = vsub.s32 0, %v1404
        %v1406 = vrot.slane %v1401, %v1405
        %1408 = vmatprep.subr.mxu0 0.0
        %1409 = vmatpush1.msra.mxu0 %v1369
        %1410 = vmatprep.subr.mxu0 0.0
        %1411 = vmatpush1.msra.mxu0 %v1370
        %1412 = vmatprep.subr.mxu0 0.0
        %1413 = vmatpush1.msra.mxu0 %v1371
        %1414 = vmatprep.subr.mxu0 0.0
        %1415 = vmatpush1.msra.mxu0 %v1372
        %1416 = vmatprep.subr.mxu0 0.0
        %1417 = vmatpush1.msra.mxu0 %v1373
        %1418 = vmatprep.subr.mxu0 0.0
        %1419 = vmatpush1.msra.mxu0 %v1374
        %1420 = vmatprep.subr.mxu0 0.0
        %1421 = vmatpush1.msra.mxu0 %v1375
        %1422 = vmatprep.subr.mxu0 0.0
        %1423 = vmatpush1.msra.mxu0 %v1376
        %1424 = vmatprep.subr.mxu0 0.0
        %1425 = vmatpush1.msra.mxu0 %v1377
        %1426 = vmatprep.subr.mxu0 0.0
        %1427 = vmatpush1.msra.mxu0 %v1378
        %1428 = vmatprep.subr.mxu0 0.0
        %1429 = vmatpush1.msra.mxu0 %v1379
        %1430 = vmatprep.subr.mxu0 0.0
        %1431 = vmatpush1.msra.mxu0 %v1380
        %1432 = vmatprep.subr.mxu0 0.0
        %1433 = vmatpush1.msra.mxu0 %v1381
        %1434 = vmatprep.subr.mxu0 0.0
        %1435 = vmatpush1.msra.mxu0 %v1382
        %1436 = vmatprep.subr.mxu0 0.0
        %1437 = vmatpush1.msra.mxu0 %v1383
        %1438 = vmatprep.subr.mxu0 0.0
        %1439 = vmatpush1.msra.mxu0 %v1384
        %1440 = vmatprep.subr.mxu0 0.0
        %1441 = vmatpush1.msra.mxu0 %v1385
        %1442 = vmatprep.subr.mxu0 0.0
        %1443 = vmatpush1.msra.mxu0 %v1386
        %1444 = vmatprep.subr.mxu0 0.0
        %1445 = vmatpush1.msra.mxu0 %v1387
        %1446 = vmatprep.subr.mxu0 0.0
        %1447 = vmatpush1.msra.mxu0 %v1388
        %1448 = vmatprep.subr.mxu0 0.0
        %1449 = vmatpush1.msra.mxu0 %v1389
        %1450 = vmatprep.subr.mxu0 0.0
        %1451 = vmatpush1.msra.mxu0 %v1390
        %1452 = vmatprep.subr.mxu0 0.0
        %1453 = vmatpush1.msra.mxu0 %v1391
        %1454 = vmatprep.subr.mxu0 0.0
        %1455 = vmatpush1.msra.mxu0 %v1392
        %1456 = vmatprep.subr.mxu0 0.0
        %1457 = vmatpush1.msra.mxu0 %v1393
        %1458 = vmatprep.subr.mxu0 0.0
        %1459 = vmatpush1.msra.mxu0 %v1394
        %1460 = vmatprep.subr.mxu0 0.0
        %1461 = vmatpush1.msra.mxu0 %v1395
        %1462 = vmatprep.subr.mxu0 0.0
        %1463 = vmatpush1.msra.mxu0 %v1396
        %1464 = vmatprep.subr.mxu0 0.0
        %1465 = vmatpush1.msra.mxu0 %v1397
        %1466 = vmatprep.subr.mxu0 0.0
        %1467 = vmatpush1.msra.mxu0 %v1398
        %1468 = vmatprep.subr.mxu0 0.0
        %1469 = vmatpush1.msra.mxu0 %v1399
        %1470 = vmatprep.subr.mxu0 0.0
        %1471 = vmatpush1.msra.mxu0 %v1400
        %1472 = vmatprep.mubr.f32.mxu0 %v1367
        %1473 = vmatmul.mubr.f32.gmra.mrb[0].mxu0 %v1365
        %v1474 = vpop.f32.mrb[0].mxu0
        %v1475 = vadd.f32 %v1406, %v1474
        %v1476 = vpop.f32.mrb[0].mxu0
        %1477 = vdwg.mxu0
        %v1478 = vadd.f32 %v1475, 3.0
        %v1479 = vmax.f32 %v1478, 0.0
        %v1480 = vmin.f32 %v1479, 6.0
        %v1481 = vmul.f32 %v1475, %v1480
        %v1482 = vmul.f32 %v1481, 0.16666667
        %v1483 = vpack.c.bf16 %v1482, %v1482
        %v1484 = vld [vmem:[%s7] sm:$0xf]
        %v1485 = vld [vmem:[%s7 + $0x4] sm:$0xf]
        %v1486 = vld [vmem:[%s7 + $0x8] sm:$0xf]
        %v1487 = vld [vmem:[%s7 + $0xc] sm:$0xf]
        %v1488 = vld [vmem:[%s7 + $0x10] sm:$0xf]
        %v1489 = vld [vmem:[%s7 + $0x14] sm:$0xf]
        %v1490 = vld [vmem:[%s7 + $0x18] sm:$0xf]
        %v1491 = vld [vmem:[%s7 + $0x1c] sm:$0xf]
        %v1492 = vld [vmem:[%s7 + $0x20] sm:$0xf]
        %v1493 = vld [vmem:[%s7 + $0x24] sm:$0xf]
        %v1494 = vld [vmem:[%s7 + $0x28] sm:$0xf]
        %v1495 = vld [vmem:[%s7 + $0x2c] sm:$0xf]
        %v1496 = vld [vmem:[%s7 + $0x30] sm:$0xf]
        %v1497 = vld [vmem:[%s7 + $0x34] sm:$0xf]
        %v1498 = vld [vmem:[%s7 + $0x38] sm:$0xf]
        %v1499 = vld [vmem:[%s7 + $0x3c] sm:$0xf]
        %v1516 = vunpack.c.l.b16 %v1484
        %v1517 = vunpack.c.l.b16 %v1485
        %v1518 = vunpack.c.l.b16 %v1486
        %v1519 = vunpack.c.l.b16 %v1487
        %v1520 = vunpack.c.l.b16 %v1488
        %v1521 = vunpack.c.l.b16 %v1489
        %v1522 = vunpack.c.l.b16 %v1490
        %v1523 = vunpack.c.l.b16 %v1491
        %v1524 = vunpack.c.l.b16 %v1492
        %v1525 = vunpack.c.l.b16 %v1493
        %v1526 = vunpack.c.l.b16 %v1494
        %v1527 = vunpack.c.l.b16 %v1495
        %v1528 = vunpack.c.l.b16 %v1496
        %v1529 = vunpack.c.l.b16 %v1497
        %v1530 = vunpack.c.l.b16 %v1498
        %v1531 = vunpack.c.l.b16 %v1499
        %v1532 = vpack.c.b16 %v1517, %v1516
        %v1533 = vpack.c.b16 %v1519, %v1518
        %v1534 = vpack.c.b16 %v1521, %v1520
        %v1535 = vpack.c.b16 %v1523, %v1522
        %v1536 = vpack.c.b16 %v1525, %v1524
        %v1537 = vpack.c.b16 %v1527, %v1526
        %v1538 = vpack.c.b16 %v1529, %v1528
        %v1539 = vpack.c.b16 %v1531, %v1530
        %1548 = vmatprep.subr.bf16.mxu0 0
        %1549 = vmatpush1.bf16.msra.mxu0 %v1532
        %1550 = vmatprep.subr.bf16.mxu0 0
        %1551 = vmatpush1.bf16.msra.mxu0 %v1533
        %1552 = vmatprep.subr.bf16.mxu0 0
        %1553 = vmatpush1.bf16.msra.mxu0 %v1534
        %1554 = vmatprep.subr.bf16.mxu0 0
        %1555 = vmatpush1.bf16.msra.mxu0 %v1535
        %1556 = vmatprep.subr.bf16.mxu0 0
        %1557 = vmatpush1.bf16.msra.mxu0 %v1536
        %1558 = vmatprep.subr.bf16.mxu0 0
        %1559 = vmatpush1.bf16.msra.mxu0 %v1537
        %1560 = vmatprep.subr.bf16.mxu0 0
        %1561 = vmatpush1.bf16.msra.mxu0 %v1538
        %1562 = vmatprep.subr.bf16.mxu0 0
        %1563 = vmatpush1.bf16.msra.mxu0 %v1539
        %1564 = vmatprep.subr.bf16.mxu0 0
        %1565 = vmatpush1.bf16.msra.mxu0 0
        %1566 = vmatprep.subr.bf16.mxu0 0
        %1567 = vmatpush1.bf16.msra.mxu0 0
        %1568 = vmatprep.subr.bf16.mxu0 0
        %1569 = vmatpush1.bf16.msra.mxu0 0
        %1570 = vmatprep.subr.bf16.mxu0 0
        %1571 = vmatpush1.bf16.msra.mxu0 0
        %1572 = vmatprep.subr.bf16.mxu0 0
        %1573 = vmatpush1.bf16.msra.mxu0 0
        %1574 = vmatprep.subr.bf16.mxu0 0
        %1575 = vmatpush1.bf16.msra.mxu0 0
        %1576 = vmatprep.subr.bf16.mxu0 0
        %1577 = vmatpush1.bf16.msra.mxu0 0
        %1578 = vmatprep.subr.bf16.mxu0 0
        %1579 = vmatpush1.bf16.msra.mxu0 0
        %1580 = vmatprep.mubr.bf16.mxu0 0
        %1581 = vmatmul.mubr.bf16.gmra.mrb[0].mxu0 %v1483
        %v1582 = vpop.f32.mrb[0].mxu0
        %v1583 = vadd.f32 0.0, %v1582
        %v1584 = vpop.f32.mrb[0].mxu0
        %v1585 = vpop.f32.mrb[0].mxu0
        %v1586 = vpop.f32.mrb[0].mxu0
        %1587 = vdwg.mxu0
        %v1588 = vpack.c.bf16 %v1583, %v1583
        %v1589 = vld [vmem:[%s8] sm:$0xf]
        %v1590 = vld [vmem:[%s8 + $0x4] sm:$0xf]
        %v1591 = vld [vmem:[%s8 + $0x8] sm:$0xf]
        %v1592 = vld [vmem:[%s8 + $0xc] sm:$0xf]
        %v1593 = vld [vmem:[#allocation13] sm:$0x1]
        %v1595 = vlaneseq
        %v1596 = vshrl.u32 %v1595, 7
        %v1597 = vsub.s32 0, %v1596
        %v1598 = vrot.slane %v1593, %v1597
        %v1604 = vunpack.c.l.b16 %v1589
        %v1605 = vunpack.c.l.b16 %v1590
        %v1606 = vunpack.c.l.b16 %v1591
        %v1607 = vunpack.c.l.b16 %v1592
        %v1608 = vpack.c.b16 %v1605, %v1604
        %v1609 = vpack.c.b16 %v1607, %v1606
        %v1613 = vsel %vm927, %v1588, 0
        %1615 = vmatprep.subr.bf16.mxu0 0
        %1616 = vmatpush1.bf16.msra.mxu0 %v1608
        %1617 = vmatprep.subr.bf16.mxu0 0
        %1618 = vmatpush1.bf16.msra.mxu0 %v1609
        %1619 = vmatprep.subr.bf16.mxu0 0
        %1620 = vmatpush1.bf16.msra.mxu0 0
        %1621 = vmatprep.subr.bf16.mxu0 0
        %1622 = vmatpush1.bf16.msra.mxu0 0
        %1623 = vmatprep.subr.bf16.mxu0 0
        %1624 = vmatpush1.bf16.msra.mxu0 0
        %1625 = vmatprep.subr.bf16.mxu0 0
        %1626 = vmatpush1.bf16.msra.mxu0 0
        %1627 = vmatprep.subr.bf16.mxu0 0
        %1628 = vmatpush1.bf16.msra.mxu0 0
        %1629 = vmatprep.subr.bf16.mxu0 0
        %1630 = vmatpush1.bf16.msra.mxu0 0
        %1631 = vmatprep.subr.bf16.mxu0 0
        %1632 = vmatpush1.bf16.msra.mxu0 0
        %1633 = vmatprep.subr.bf16.mxu0 0
        %1634 = vmatpush1.bf16.msra.mxu0 0
        %1635 = vmatprep.subr.bf16.mxu0 0
        %1636 = vmatpush1.bf16.msra.mxu0 0
        %1637 = vmatprep.subr.bf16.mxu0 0
        %1638 = vmatpush1.bf16.msra.mxu0 0
        %1639 = vmatprep.subr.bf16.mxu0 0
        %1640 = vmatpush1.bf16.msra.mxu0 0
        %1641 = vmatprep.subr.bf16.mxu0 0
        %1642 = vmatpush1.bf16.msra.mxu0 0
        %1643 = vmatprep.subr.bf16.mxu0 0
        %1644 = vmatpush1.bf16.msra.mxu0 0
        %1645 = vmatprep.subr.bf16.mxu0 0
        %1646 = vmatpush1.bf16.msra.mxu0 0
        %1647 = vmatprep.mubr.bf16.mxu0 0
        %1648 = vmatmul.mubr.bf16.gmra.mrb[0].mxu0 %v1613
        %v1649 = vpop.f32.mrb[0].mxu0
        %v1650 = vadd.f32 %v1598, %v1649
        %v1651 = vpop.f32.mrb[0].mxu0
        %v1652 = vpop.f32.mrb[0].mxu0
        %v1653 = vpop.f32.mrb[0].mxu0
        %1654 = vdwg.mxu0
        %v1655 = vadd.f32 %v1650, 3.0
        %v1656 = vmax.f32 %v1655, 0.0
        %v1657 = vmin.f32 %v1656, 6.0
        %v1658 = vmul.f32 %v1650, %v1657
        %v1659 = vmul.f32 %v1658, 0.16666667
        %v1660 = vpack.c.bf16 %v1659, %v1659
        %v1661 = vld [vmem:[#allocation15] sm:$0x1]
        %v1662 = vld [vmem:[#allocation16] sm:$0x1]
        %v1664 = vlaneseq
        %v1665 = vshrl.u32 %v1664, 7
        %v1666 = vsub.s32 0, %v1665
        %v1667 = vrot.slane %v1662, %v1666
        %vm1669 = vcmask 15360
        %v1671 = vsel %vm1669, %v1660, 0
        %vm1673 = vcmask 1040384
        %v1675 = vsel %vm1673, %v1661, 0
        %1677 = vmatprep.subr.bf16.mxu0 0
        %1678 = vmatpush1.bf16.msra.mxu0 %v1675
        %1679 = vmatprep.subr.bf16.mxu0 0
        %1680 = vmatpush1.bf16.msra.mxu0 0
        %1681 = vmatprep.subr.bf16.mxu0 0
        %1682 = vmatpush1.bf16.msra.mxu0 0
        %1683 = vmatprep.subr.bf16.mxu0 0
        %1684 = vmatpush1.bf16.msra.mxu0 0
        %1685 = vmatprep.subr.bf16.mxu0 0
        %1686 = vmatpush1.bf16.msra.mxu0 0
        %1687 = vmatprep.subr.bf16.mxu0 0
        %1688 = vmatpush1.bf16.msra.mxu0 0
        %1689 = vmatprep.subr.bf16.mxu0 0
        %1690 = vmatpush1.bf16.msra.mxu0 0
        %1691 = vmatprep.subr.bf16.mxu0 0
        %1692 = vmatpush1.bf16.msra.mxu0 0
        %1693 = vmatprep.subr.bf16.mxu0 0
        %1694 = vmatpush1.bf16.msra.mxu0 0
        %1695 = vmatprep.subr.bf16.mxu0 0
        %1696 = vmatpush1.bf16.msra.mxu0 0
        %1697 = vmatprep.subr.bf16.mxu0 0
        %1698 = vmatpush1.bf16.msra.mxu0 0
        %1699 = vmatprep.subr.bf16.mxu0 0
        %1700 = vmatpush1.bf16.msra.mxu0 0
        %1701 = vmatprep.subr.bf16.mxu0 0
        %1702 = vmatpush1.bf16.msra.mxu0 0
        %1703 = vmatprep.subr.bf16.mxu0 0
        %1704 = vmatpush1.bf16.msra.mxu0 0
        %1705 = vmatprep.subr.bf16.mxu0 0
        %1706 = vmatpush1.bf16.msra.mxu0 0
        %1707 = vmatprep.subr.bf16.mxu0 0
        %1708 = vmatpush1.bf16.msra.mxu0 0
        %1709 = vmatprep.mubr.bf16.mxu0 0
        %1710 = vmatmul.mubr.bf16.gmra.mrb[0].mxu0 %v1671
        %v1711 = vpop.f32.mrb[0].mxu0
        %v1712 = vadd.f32 %v1667, %v1711
        %v1713 = vpop.f32.mrb[0].mxu0
        %v1714 = vpop.f32.mrb[0].mxu0
        %v1715 = vpop.f32.mrb[0].mxu0
        %1716 = vdwg.mxu0
        %v1717 = vxor.u32 %v1712, 2147483648
        %v1718 = vmul.f32 %v1717, 1.442695
        %v1719 = vpow.pop %v1718
        %v1720 = vadd.f32 %v1719, 1.0
        %v1721 = vrcp.pop %v1720
        %v1722 = vmul.f32 1.0, %v1721
        %vm1723 = vcmask 1043456
        %v1724 = vsel %vm1723, %v1482, 0.0
        %v1725 = vrot.slane %v1724, 4
        %v1726 = vadd.f32 %v1724, %v1725
        %v1727 = vrot.slane %v1726, 2
        %v1728 = vadd.f32 %v1726, %v1727
        %v1729 = vrot.slane %v1728, 1
        %v1730 = vadd.f32 %v1728, %v1729
        %v1731 = vrcp.pop 4.0
        %v1732 = vmul.f32 %v1730, %v1731
        %v1733 = vpack.c.bf16 %v1732, %v1732
        %v1734 = vld [vmem:[%s12] sm:$0xf]
        %v1735 = vld [vmem:[%s12 + $0x4] sm:$0xf]
        %v1736 = vld [vmem:[%s12 + $0x8] sm:$0xf]
        %v1737 = vld [vmem:[%s12 + $0xc] sm:$0xf]
        %v1738 = vld [vmem:[%s12 + $0x10] sm:$0xf]
        %v1739 = vld [vmem:[%s12 + $0x14] sm:$0xf]
        %v1740 = vld [vmem:[%s12 + $0x18] sm:$0xf]
        %v1741 = vld [vmem:[%s12 + $0x1c] sm:$0xf]
        %v1742 = vld [vmem:[%s12 + $0x20] sm:$0xf]
        %v1743 = vld [vmem:[%s12 + $0x24] sm:$0xf]
        %v1744 = vld [vmem:[%s12 + $0x28] sm:$0xf]
        %v1745 = vld [vmem:[%s12 + $0x2c] sm:$0xf]
        %v1746 = vld [vmem:[%s12 + $0x30] sm:$0xf]
        %v1747 = vld [vmem:[%s12 + $0x34] sm:$0xf]
        %v1748 = vld [vmem:[%s12 + $0x38] sm:$0xf]
        %v1749 = vld [vmem:[%s12 + $0x3c] sm:$0xf]
        %v1750 = vld [vmem:[#allocation18] sm:$0x1]
        %v1767 = vunpack.c.l.b16 %v1734
        %v1768 = vunpack.c.l.b16 %v1735
        %v1769 = vunpack.c.l.b16 %v1736
        %v1770 = vunpack.c.l.b16 %v1737
        %v1771 = vunpack.c.l.b16 %v1738
        %v1772 = vunpack.c.l.b16 %v1739
        %v1773 = vunpack.c.l.b16 %v1740
        %v1774 = vunpack.c.l.b16 %v1741
        %v1775 = vunpack.c.l.b16 %v1742
        %v1776 = vunpack.c.l.b16 %v1743
        %v1777 = vunpack.c.l.b16 %v1744
        %v1778 = vunpack.c.l.b16 %v1745
        %v1779 = vunpack.c.l.b16 %v1746
        %v1780 = vunpack.c.l.b16 %v1747
        %v1781 = vunpack.c.l.b16 %v1748
        %v1782 = vunpack.c.l.b16 %v1749
        %v1783 = vpack.c.b16 %v1768, %v1767
        %v1784 = vpack.c.b16 %v1770, %v1769
        %v1785 = vpack.c.b16 %v1772, %v1771
        %v1786 = vpack.c.b16 %v1774, %v1773
        %v1787 = vpack.c.b16 %v1776, %v1775
        %v1788 = vpack.c.b16 %v1778, %v1777
        %v1789 = vpack.c.b16 %v1780, %v1779
        %v1790 = vpack.c.b16 %v1782, %v1781
        %1799 = vmatprep.subr.bf16.mxu0 0
        %1800 = vmatpush1.bf16.msra.mxu0 %v1783
        %1801 = vmatprep.subr.bf16.mxu0 0
        %1802 = vmatpush1.bf16.msra.mxu0 %v1784
        %1803 = vmatprep.subr.bf16.mxu0 0
        %1804 = vmatpush1.bf16.msra.mxu0 %v1785
        %1805 = vmatprep.subr.bf16.mxu0 0
        %1806 = vmatpush1.bf16.msra.mxu0 %v1786
        %1807 = vmatprep.subr.bf16.mxu0 0
        %1808 = vmatpush1.bf16.msra.mxu0 %v1787
        %1809 = vmatprep.subr.bf16.mxu0 0
        %1810 = vmatpush1.bf16.msra.mxu0 %v1788
        %1811 = vmatprep.subr.bf16.mxu0 0
        %1812 = vmatpush1.bf16.msra.mxu0 %v1789
        %1813 = vmatprep.subr.bf16.mxu0 0
        %1814 = vmatpush1.bf16.msra.mxu0 %v1790
        %1815 = vmatprep.subr.bf16.mxu0 0
        %1816 = vmatpush1.bf16.msra.mxu0 0
        %1817 = vmatprep.subr.bf16.mxu0 0
        %1818 = vmatpush1.bf16.msra.mxu0 0
        %1819 = vmatprep.subr.bf16.mxu0 0
        %1820 = vmatpush1.bf16.msra.mxu0 0
        %1821 = vmatprep.subr.bf16.mxu0 0
        %1822 = vmatpush1.bf16.msra.mxu0 0
        %1823 = vmatprep.subr.bf16.mxu0 0
        %1824 = vmatpush1.bf16.msra.mxu0 0
        %1825 = vmatprep.subr.bf16.mxu0 0
        %1826 = vmatpush1.bf16.msra.mxu0 0
        %1827 = vmatprep.subr.bf16.mxu0 0
        %1828 = vmatpush1.bf16.msra.mxu0 0
        %1829 = vmatprep.subr.bf16.mxu0 0
        %1830 = vmatpush1.bf16.msra.mxu0 0
        %1831 = vmatprep.mubr.bf16.mxu0 0
        %1832 = vmatmul.mubr.bf16.gmra.mrb[0].mxu0 %v1733
        %v1833 = vpop.f32.mrb[0].mxu0
        %v1834 = vadd.f32 %v1750, %v1833
        %v1835 = vpop.f32.mrb[0].mxu0
        %v1836 = vpop.f32.mrb[0].mxu0
        %v1837 = vpop.f32.mrb[0].mxu0
        %1838 = vdwg.mxu0
        %v1839 = vadd.f32 %v1834, 3.0
        %v1840 = vmax.f32 %v1839, 0.0
        %v1841 = vmin.f32 %v1840, 6.0
        %v1842 = vmul.f32 %v1834, %v1841
        %v1843 = vmul.f32 %v1842, 0.16666667
        %v1844 = vpack.c.bf16 %v1843, %v1843
        %v1845 = vld [vmem:[%s14] sm:$0xf]
        %v1846 = vld [vmem:[%s15] sm:$0x1]
        %v1848 = vsel %vm1294, %v1844, 0
        %v1851 = vsel %vm1723, %v1845, 0
        %1853 = vmatprep.subr.bf16.mxu0 0
        %1854 = vmatpush1.bf16.msra.mxu0 %v1851
        %1855 = vmatprep.subr.bf16.mxu0 0
        %1856 = vmatpush1.bf16.msra.mxu0 0
        %1857 = vmatprep.subr.bf16.mxu0 0
        %1858 = vmatpush1.bf16.msra.mxu0 0
        %1859 = vmatprep.subr.bf16.mxu0 0
        %1860 = vmatpush1.bf16.msra.mxu0 0
        %1861 = vmatprep.subr.bf16.mxu0 0
        %1862 = vmatpush1.bf16.msra.mxu0 0
        %1863 = vmatprep.subr.bf16.mxu0 0
        %1864 = vmatpush1.bf16.msra.mxu0 0
        %1865 = vmatprep.subr.bf16.mxu0 0
        %1866 = vmatpush1.bf16.msra.mxu0 0
        %1867 = vmatprep.subr.bf16.mxu0 0
        %1868 = vmatpush1.bf16.msra.mxu0 0
        %1869 = vmatprep.subr.bf16.mxu0 0
        %1870 = vmatpush1.bf16.msra.mxu0 0
        %1871 = vmatprep.subr.bf16.mxu0 0
        %1872 = vmatpush1.bf16.msra.mxu0 0
        %1873 = vmatprep.subr.bf16.mxu0 0
        %1874 = vmatpush1.bf16.msra.mxu0 0
        %1875 = vmatprep.subr.bf16.mxu0 0
        %1876 = vmatpush1.bf16.msra.mxu0 0
        %1877 = vmatprep.subr.bf16.mxu0 0
        %1878 = vmatpush1.bf16.msra.mxu0 0
        %1879 = vmatprep.subr.bf16.mxu0 0
        %1880 = vmatpush1.bf16.msra.mxu0 0
        %1881 = vmatprep.subr.bf16.mxu0 0
        %1882 = vmatpush1.bf16.msra.mxu0 0
        %1883 = vmatprep.subr.bf16.mxu0 0
        %1884 = vmatpush1.bf16.msra.mxu0 0
        %1885 = vmatprep.mubr.bf16.mxu0 0
        %1886 = vmatmul.mubr.bf16.gmra.mrb[0].mxu0 %v1848
        %v1887 = vpop.f32.mrb[0].mxu0
        %v1888 = vadd.f32 %v1846, %v1887
        %v1889 = vpop.f32.mrb[0].mxu0
        %v1890 = vpop.f32.mrb[0].mxu0
        %v1891 = vpop.f32.mrb[0].mxu0
        %1892 = vdwg.mxu0
        %v1893 = vxor.u32 %v1888, 2147483648
        %v1894 = vmul.f32 %v1893, 1.442695
        %v1895 = vpow.pop %v1894
        %v1896 = vadd.f32 %v1895, 1.0
        %v1897 = vrcp.pop %v1896
        %v1898 = vmul.f32 1.0, %v1897
        %v1899 = vmul.f32 %v1482, %v1722
        %v1900 = vlaneseq
        %v1901 = vshrl.u32 %v1900, 7
        %v1902 = vsub.s32 0, %v1901
        %v1903 = vrot.slane %v1898, %v1902
        %v1904 = vmul.f32 %v1899, %v1903
        %1905 = vst [vmem:[#allocation3] sm:$0x3f] 0.0
        %vm1906 = vcmask 521216
        %1907 = vst.msk [vmem:[#allocation3 + $0x8] sm:$0x3f] %vm1906, 0.0
        %v1909 = vrot.slane %v1904, 7
        %1910 = vrot.lane.b32.xlu0 %v1909, 32
        %v1911 = vpop.permute.xlu0 %1910
        %vm1913 = vcmask 1044737
        %1914 = vst.msk [vmem:[#allocation3] sm:$0x1e] %vm1913, %v1911
        %vm1915 = vcmask 258049
        %1916 = vst.msk [vmem:[#allocation3 + $0x8] sm:$0x1e] %vm1915, %v1911
        %v1917 = vld [vmem:[#allocation3] sm:$0x3f]
        %v1918 = vld [vmem:[#allocation3 + $0x8] sm:$0x3f]
        %v1919 = vld [vmem:[%s16] sm:$0xff]
        %v1920 = vld [vmem:[%s16 + $0x8] sm:$0x1]
        %v1921 = vlaneseq
        %v1922 = vshrl.u32 %v1921, 7
        %v1923 = vsub.s32 0, %v1922
        %v1924 = vrot.slane %v1919, %v1923
        %v1925 = vmul.f32 %v1917, %v1924
        %v1926 = vlaneseq
        %v1927 = vshrl.u32 %v1926, 7
        %v1928 = vsub.s32 1, %v1927
        %v1929 = vrot.slane %v1919, %v1928
        %1931 = vrot.lane.b32.xlu0 %v1929, 32
        %v1932 = vpop.permute.xlu0 %1931
        %v1934 = vmul.f32 %v1917, %v1932
        %v1935 = vmul.f32 %v1918, %v1932
        %1938 = vrot.lane.b32.xlu0 %v1934, 96
        %v1939 = vpop.permute.xlu0 %1938
        %1940 = vrot.lane.b32.xlu0 %v1935, 96
        %v1941 = vpop.permute.xlu0 %1940
        %v1942 = vsel %vm992, %v1939, %v1941
        %v1944 = vadd.f32 %v1925, %v1942
        %v1945 = vlaneseq
        %v1946 = vshrl.u32 %v1945, 7
        %v1947 = vsub.s32 2, %v1946
        %v1948 = vrot.slane %v1919, %v1947
        %1950 = vrot.lane.b32.xlu0 %v1948, 64
        %v1951 = vpop.permute.xlu0 %1950
        %v1953 = vmul.f32 %v1917, %v1951
        %v1954 = vmul.f32 %v1918, %v1951
        %1957 = vrot.lane.b32.xlu0 %v1953, 64
        %v1958 = vpop.permute.xlu0 %1957
        %1959 = vrot.lane.b32.xlu0 %v1954, 64
        %v1960 = vpop.permute.xlu0 %1959
        %v1961 = vsel %vm913, %v1958, %v1960
        %v1963 = vadd.f32 %v1944, %v1961
        %v1964 = vlaneseq
        %v1965 = vshrl.u32 %v1964, 7
        %v1966 = vsub.s32 3, %v1965
        %v1967 = vrot.slane %v1919, %v1966
        %v1968 = vmul.f32 %v1917, %v1967
        %v1970 = vrot.slane %v1968, 1
        %v1972 = vadd.f32 %v1963, %v1970
        %v1973 = vlaneseq
        %v1974 = vshrl.u32 %v1973, 7
        %v1975 = vsub.s32 4, %v1974
        %v1976 = vrot.slane %v1919, %v1975
        %1978 = vrot.lane.b32.xlu0 %v1976, 32
        %v1979 = vpop.permute.xlu0 %1978
        %v1981 = vmul.f32 %v1917, %v1979
        %v1982 = vmul.f32 %v1918, %v1979
        %v1985 = vrot.slane %v1981, 1
        %v1986 = vrot.slane %v1982, 1
        %1987 = vrot.lane.b32.xlu0 %v1985, 96
        %v1988 = vpop.permute.xlu0 %1987
        %1989 = vrot.lane.b32.xlu0 %v1986, 96
        %v1990 = vpop.permute.xlu0 %1989
        %v1991 = vsel %vm992, %v1988, %v1990
        %v1993 = vadd.f32 %v1972, %v1991
        %v1994 = vlaneseq
        %v1995 = vshrl.u32 %v1994, 7
        %v1996 = vsub.s32 5, %v1995
        %v1997 = vrot.slane %v1919, %v1996
        %1999 = vrot.lane.b32.xlu0 %v1997, 64
        %v2000 = vpop.permute.xlu0 %1999
        %v2002 = vmul.f32 %v1917, %v2000
        %v2003 = vmul.f32 %v1918, %v2000
        %v2006 = vrot.slane %v2002, 1
        %v2007 = vrot.slane %v2003, 1
        %2008 = vrot.lane.b32.xlu0 %v2006, 64
        %v2009 = vpop.permute.xlu0 %2008
        %2010 = vrot.lane.b32.xlu0 %v2007, 64
        %v2011 = vpop.permute.xlu0 %2010
        %v2012 = vsel %vm913, %v2009, %v2011
        %v2014 = vadd.f32 %v1993, %v2012
        %v2015 = vlaneseq
        %v2016 = vshrl.u32 %v2015, 7
        %v2017 = vsub.s32 6, %v2016
        %v2018 = vrot.slane %v1919, %v2017
        %v2019 = vmul.f32 %v1917, %v2018
        %v2021 = vrot.slane %v2019, 2
        %v2023 = vadd.f32 %v2014, %v2021
        %v2024 = vlaneseq
        %v2025 = vshrl.u32 %v2024, 7
        %v2026 = vsub.s32 7, %v2025
        %v2027 = vrot.slane %v1919, %v2026
        %2029 = vrot.lane.b32.xlu0 %v2027, 32
        %v2030 = vpop.permute.xlu0 %2029
        %v2032 = vmul.f32 %v1917, %v2030
        %v2033 = vmul.f32 %v1918, %v2030
        %v2036 = vrot.slane %v2032, 2
        %v2037 = vrot.slane %v2033, 2
        %2038 = vrot.lane.b32.xlu0 %v2036, 96
        %v2039 = vpop.permute.xlu0 %2038
        %2040 = vrot.lane.b32.xlu0 %v2037, 96
        %v2041 = vpop.permute.xlu0 %2040
        %v2042 = vsel %vm992, %v2039, %v2041
        %v2044 = vadd.f32 %v2023, %v2042
        %v2045 = vlaneseq
        %v2046 = vshrl.u32 %v2045, 7
        %v2047 = vsub.s32 0, %v2046
        %v2048 = vrot.slane %v1920, %v2047
        %2050 = vrot.lane.b32.xlu0 %v2048, 64
        %v2051 = vpop.permute.xlu0 %2050
        %v2053 = vmul.f32 %v1917, %v2051
        %v2054 = vmul.f32 %v1918, %v2051
        %v2057 = vrot.slane %v2053, 2
        %v2058 = vrot.slane %v2054, 2
        %2059 = vrot.lane.b32.xlu0 %v2057, 64
        %v2060 = vpop.permute.xlu0 %2059
        %2061 = vrot.lane.b32.xlu0 %v2058, 64
        %v2062 = vpop.permute.xlu0 %2061
        %v2063 = vsel %vm913, %v2060, %v2062
        %v2065 = vadd.f32 %v2044, %v2063
        %v2066 = vld [vmem:[%s17] sm:$0x1]
        %v2068 = vlaneseq
        %v2069 = vshrl.u32 %v2068, 7
        %v2070 = vsub.s32 0, %v2069
        %v2071 = vrot.slane %v2066, %v2070
        %v2073 = vadd.f32 %v2065, %v2071
        %v2074 = vadd.f32 %v2073, 3.0
        %v2075 = vmax.f32 %v2074, 0.0
        %v2076 = vmin.f32 %v2075, 6.0
        %v2077 = vmul.f32 %v2073, %v2076
        %v2078 = vmul.f32 %v2077, 0.16666667
        %v2079 = vpack.c.bf16 %v2078, %v2078
        %v2080 = vld [vmem:[%s18] sm:$0xf]
        %v2081 = vld [vmem:[%s18 + $0x4] sm:$0xf]
        %v2082 = vld [vmem:[%s18 + $0x8] sm:$0xf]
        %v2083 = vld [vmem:[%s18 + $0xc] sm:$0xf]
        %v2084 = vld [vmem:[%s18 + $0x10] sm:$0xf]
        %v2085 = vld [vmem:[%s18 + $0x14] sm:$0xf]
        %v2086 = vld [vmem:[%s18 + $0x18] sm:$0xf]
        %v2087 = vld [vmem:[%s18 + $0x1c] sm:$0xf]
        %v2088 = vld [vmem:[%s18 + $0x20] sm:$0xf]
        %v2089 = vld [vmem:[%s18 + $0x24] sm:$0xf]
        %v2090 = vld [vmem:[%s18 + $0x28] sm:$0xf]
        %v2091 = vld [vmem:[%s18 + $0x2c] sm:$0xf]
        %v2092 = vld [vmem:[%s18 + $0x30] sm:$0xf]
        %v2093 = vld [vmem:[%s18 + $0x34] sm:$0xf]
        %v2094 = vld [vmem:[%s18 + $0x38] sm:$0xf]
        %v2095 = vld [vmem:[%s18 + $0x3c] sm:$0xf]
        %v2096 = vld [vmem:[%s19] sm:$0x1]
        %v2098 = vlaneseq
        %v2099 = vshrl.u32 %v2098, 7
        %v2100 = vsub.s32 0, %v2099
        %v2101 = vrot.slane %v2096, %v2100
        %v2119 = vunpack.c.l.b16 %v2080
        %v2120 = vunpack.c.l.b16 %v2081
        %v2121 = vunpack.c.l.b16 %v2082
        %v2122 = vunpack.c.l.b16 %v2083
        %v2123 = vunpack.c.l.b16 %v2084
        %v2124 = vunpack.c.l.b16 %v2085
        %v2125 = vunpack.c.l.b16 %v2086
        %v2126 = vunpack.c.l.b16 %v2087
        %v2127 = vunpack.c.l.b16 %v2088
        %v2128 = vunpack.c.l.b16 %v2089
        %v2129 = vunpack.c.l.b16 %v2090
        %v2130 = vunpack.c.l.b16 %v2091
        %v2131 = vunpack.c.l.b16 %v2092
        %v2132 = vunpack.c.l.b16 %v2093
        %v2133 = vunpack.c.l.b16 %v2094
        %v2134 = vunpack.c.l.b16 %v2095
        %v2135 = vpack.c.b16 %v2120, %v2119
        %v2136 = vpack.c.b16 %v2122, %v2121
        %v2137 = vpack.c.b16 %v2124, %v2123
        %v2138 = vpack.c.b16 %v2126, %v2125
        %v2139 = vpack.c.b16 %v2128, %v2127
        %v2140 = vpack.c.b16 %v2130, %v2129
        %v2141 = vpack.c.b16 %v2132, %v2131
        %v2142 = vpack.c.b16 %v2134, %v2133
        %2151 = vmatprep.subr.bf16.mxu0 0
        %2152 = vmatpush1.bf16.msra.mxu0 %v2135
        %2153 = vmatprep.subr.bf16.mxu0 0
        %2154 = vmatpush1.bf16.msra.mxu0 %v2136
        %2155 = vmatprep.subr.bf16.mxu0 0
        %2156 = vmatpush1.bf16.msra.mxu0 %v2137
        %2157 = vmatprep.subr.bf16.mxu0 0
        %2158 = vmatpush1.bf16.msra.mxu0 %v2138
        %2159 = vmatprep.subr.bf16.mxu0 0
        %2160 = vmatpush1.bf16.msra.mxu0 %v2139
        %2161 = vmatprep.subr.bf16.mxu0 0
        %2162 = vmatpush1.bf16.msra.mxu0 %v2140
        %2163 = vmatprep.subr.bf16.mxu0 0
        %2164 = vmatpush1.bf16.msra.mxu0 %v2141
        %2165 = vmatprep.subr.bf16.mxu0 0
        %2166 = vmatpush1.bf16.msra.mxu0 %v2142
        %2167 = vmatprep.subr.bf16.mxu0 0
        %2168 = vmatpush1.bf16.msra.mxu0 0
        %2169 = vmatprep.subr.bf16.mxu0 0
        %2170 = vmatpush1.bf16.msra.mxu0 0
        %2171 = vmatprep.subr.bf16.mxu0 0
        %2172 = vmatpush1.bf16.msra.mxu0 0
        %2173 = vmatprep.subr.bf16.mxu0 0
        %2174 = vmatpush1.bf16.msra.mxu0 0
        %2175 = vmatprep.subr.bf16.mxu0 0
        %2176 = vmatpush1.bf16.msra.mxu0 0
        %2177 = vmatprep.subr.bf16.mxu0 0
        %2178 = vmatpush1.bf16.msra.mxu0 0
        %2179 = vmatprep.subr.bf16.mxu0 0
        %2180 = vmatpush1.bf16.msra.mxu0 0
        %2181 = vmatprep.subr.bf16.mxu0 0
        %2182 = vmatpush1.bf16.msra.mxu0 0
        %2183 = vmatprep.mubr.bf16.mxu0 0
        %2184 = vmatmul.mubr.bf16.gmra.mrb[0].mxu0 %v2079
        %v2185 = vpop.f32.mrb[0].mxu0
        %v2186 = vadd.f32 %v2101, %v2185
        %v2187 = vpop.f32.mrb[0].mxu0
        %v2188 = vpop.f32.mrb[0].mxu0
        %v2189 = vpop.f32.mrb[0].mxu0
        %2190 = vdwg.mxu0
        %vm2191 = vcmask 519168
        %2192 = vst.msk [vmem:[%s748] sm:$0xf] %vm2191, %v2186
        %s2193 = sand.u32 %s474, 1
        %s2194 = scalar_lea.sflag [#allocation6], %s2193
        %s2195 = sand.u32 %s474, 1
        %s2196 = smul.addr %s2195, 4
        %s2197 = scalar_lea.vmem [#allocation19], %s2196
        // Predicated region
        $region137: #{tpu_custom_call.1} parent=99 // pred_check
          %p2198 = pneg %p484
        $region138: #{tpu_custom_call.1} parent=99 // pred_check_branch
          %2200 = sbr.rel (%p2198) target = $region140
        $region139: #{tpu_custom_call.1} parent=99 // pred_region
          %s2202 = ssub.s32 64, 64
          %2203 = vsyncadd %s2194, %s2202
          %s2204 = smul.addr %s41, 64
          %s2205 = scalar_lea.hbm %s20, %s2204
          %s2207 = sshll.u32 %s2197, 4
          %s2208 = int_to_ptr.vmem [resolvable:$true] %s2207
          %2210 = dma.vmem_to_hbm [thread:$0]  %s2208, 64, %s2205, %s2194
        $region140: #{tpu_custom_call.1} parent=99 // pred_fallthru
          _
      $region100: #{tpu_custom_call.1} parent=5 // pred_fallthru
        _
      %p2211 = scmp.le.s32.totalorder 2, %s36
      // Predicated region
      $region141: #{tpu_custom_call.1} parent=5 // pred_check
        %p2212 = pneg %p2211
      $region142: #{tpu_custom_call.1} parent=5 // pred_check_branch
        %2214 = sbr.rel (%p2212) target = $region144
      $region143: #{tpu_custom_call.1} parent=5 // pred_region
        %s2215 = ssub.s32 %s36, 2
        // Predicated region
        $region145: #{tpu_custom_call.1} parent=143 // pred_check
          %p2216 = pneg %p490
        $region146: #{tpu_custom_call.1} parent=143 // pred_check_branch
          %2218 = sbr.rel (%p2216) target = $region148
        $region147: #{tpu_custom_call.1} parent=143 // pred_region
          %s2219 = sand.u32 %s475, 1
          %s2220 = scalar_lea.sflag [#allocation6], %s2219
          %s2221 = sand.u32 %s475, 1
          %s2222 = smul.addr %s2221, 4
          %s2223 = scalar_lea.vmem [#allocation19], %s2222
          %2224 = dma.done %s2220, 64
        $region148: #{tpu_custom_call.1} parent=143 // pred_fallthru
          _
      $region144: #{tpu_custom_call.1} parent=5 // pred_fallthru
        _
    $region6: #{tpu_custom_call.1} parent=1 // loop_footer
      %s40 = sadd.s32 1, %s36
    $region7: #{tpu_custom_call.1} parent=1 // loop_footer_branch
      %35 = sbr.rel target = $region3
    $region8: #{tpu_custom_call.1} parent=1 // loop_exit
      _
    %2225 = vsyncpa [#allocation5], 1
    %s2226 = scalar_lea.sflag [#allocation5], 1
    %2227 = vsyncpa %s2226, 1
    %2228 = vsyncpa [#allocation8], 1
    %2229 = vsyncpa [#allocation11], 1
    %2230 = vsyncpa [#allocation14], 1
    %2231 = vsyncpa [#allocation17], 1
    %2232 = vsyncpa [#allocation6], 1
    %s2233 = scalar_lea.sflag [#allocation6], 1
    %2234 = vsyncpa %s2233, 1

</llo_original>
